<compile_context>
chip_gen: v5e
topology: v5e:2x2
jax: 0.10.0
libtpu: 0.0.40
codegen_flags: <defaults>
</compile_context>

<pallas_src>
from functools import partial

import jax
import jax.numpy as jnp
import numpy as np
from jax import lax
from jax.experimental import pallas as pl
from jax.experimental.pallas import tpu as pltpu

_HI = jax.lax.Precision.HIGHEST


def _mha_kernel(q_ref, k_ref, v_ref,
                gamma_ref, beta_ref,
                wq_ref, bq_ref,
                wk_ref, bk_ref,
                wv_ref, bv_ref,
                fcw_ref, fcb_ref,
                out_ref, attn_ref,
                *, n_head, d_k, d_v, shared_qkv):
    # Current batch element.
    q = q_ref[0]          # (len_q, d_model)
    k = k_ref[0]          # (len_k, d_model)
    v = v_ref[0]          # (len_v, d_model)

    gamma = gamma_ref[...]   # (1, d_model)
    beta = beta_ref[...]     # (1, d_model)

    def layer_norm(x):
        mean = jnp.mean(x, axis=-1, keepdims=True)
        var = jnp.mean((x - mean) ** 2, axis=-1, keepdims=True)
        return (x - mean) * lax.rsqrt(var + 1e-5) * gamma + beta  # torch eps

    qn = layer_norm(q)
    if shared_qkv:
        kn = qn
        vn = qn
    else:
        kn = layer_norm(k)
        vn = layer_norm(v)

    scale = 1.0 / (d_k ** 0.5)

    # --- Fused full-width projections (hoisted out of the head loop). -------
    # One wide MXU pass per operand; bias broadcast-added once; 1/sqrt(d_k)
    # folded into the (lq, n_head*d_k) Q activations instead of the scores.
    qh_all = (jnp.dot(qn, wq_ref[...], preferred_element_type=jnp.float32)
              + bq_ref[...]) * scale                              # (lq, H*d_k)
    kh_all = (jnp.dot(kn, wk_ref[...], preferred_element_type=jnp.float32)
              + bk_ref[...])                                      # (lk, H*d_k)
    vh_all = (jnp.dot(vn, wv_ref[...], preferred_element_type=jnp.float32)
              + bv_ref[...])                                      # (lv, H*d_v)

    # --- Per-head attention (only the (lq,lk) math stays in the loop). ------
    attn_cols = []
    o_cols = []
    for h in range(n_head):   # static python loop; n_head is small
        qh = qh_all[:, h * d_k:(h + 1) * d_k]    # static slices -> free
        kh = kh_all[:, h * d_k:(h + 1) * d_k]
        vh = vh_all[:, h * d_v:(h + 1) * d_v]

        scores = lax.dot_general(qh, kh, (((1,), (1,)), ((), ())),
                                 preferred_element_type=jnp.float32)  # (lq, lk)
        scores = scores - jnp.max(scores, axis=-1, keepdims=True)
        e = jnp.exp(scores)
        inv = pl.reciprocal(jnp.sum(e, axis=-1, keepdims=True), approx=True)
        attn_h = e * inv                                               # (lq, lk)

        attn_cols.append(attn_h)
        o_cols.append(jnp.dot(attn_h, vh, preferred_element_type=jnp.float32))

    # Single lane-dense store of all heads' attention weights:
    # slab layout (lq, n_head*len_k); wrapper reshapes to (b, h, lq, lk).
    attn_ref[0] = jnp.concatenate(attn_cols, axis=-1).astype(attn_ref.dtype)

    # Fused output projection across heads: concat -> one (lq,H*d_v)x(H*d_v,dm).
    o_all = jnp.concatenate(o_cols, axis=-1)                           # (lq, H*d_v)
    out = jnp.dot(o_all, fcw_ref[...], preferred_element_type=jnp.float32)
    out_ref[0] = (out + fcb_ref[...] + q).astype(out_ref.dtype)


def multi_head_attention(q, k, v, params, *, n_head, d_k, d_v):
    """q, k, v: (batch, seq, d_model) float32.  Returns (output, attn)."""
    sz_b, len_q, d_model = q.shape
    _, len_k, _ = k.shape
    _, len_v, _ = v.shape

    shared_qkv = (q is k) and (k is v)   # self-attention: reuse one LayerNorm

    gamma, beta, wq, bq, wk, bk, wv, bv, fcw, fcb = params

    kernel = partial(_mha_kernel, n_head=n_head, d_k=d_k, d_v=d_v,
                     shared_qkv=shared_qkv)

    full2d = lambda shape: pl.BlockSpec(shape, lambda b: (0, 0))

    out_shapes = (
        jax.ShapeDtypeStruct((sz_b, len_q, d_model), jnp.float32),
        # Lane-dense attention slab; reshaped to (b, h, lq, lk) in the wrapper.
        jax.ShapeDtypeStruct((sz_b, len_q, n_head * len_k), jnp.float32),
    )

    grid_spec = pltpu.PrefetchScalarGridSpec(
        num_scalar_prefetch=0,
        grid=(sz_b,),
        in_specs=[
            pl.BlockSpec((1, len_q, d_model), lambda b: (b, 0, 0)),
            pl.BlockSpec((1, len_k, d_model), lambda b: (b, 0, 0)),
            pl.BlockSpec((1, len_v, d_model), lambda b: (b, 0, 0)),
            full2d((1, d_model)),                 # gamma
            full2d((1, d_model)),                 # beta
            full2d((d_model, n_head * d_k)),      # wq (pre-transposed)
            full2d((1, n_head * d_k)),            # bq
            full2d((d_model, n_head * d_k)),      # wk
            full2d((1, n_head * d_k)),            # bk
            full2d((d_model, n_head * d_v)),      # wv
            full2d((1, n_head * d_v)),            # bv
            full2d((n_head * d_v, d_model)),      # fc weight (pre-transposed)
            full2d((1, d_model)),                 # fc bias
        ],
        out_specs=[
            pl.BlockSpec((1, len_q, d_model), lambda b: (b, 0, 0)),
            pl.BlockSpec((1, len_q, n_head * len_k), lambda b: (b, 0, 0)),
        ],
    )

    out, attn_slab = pl.pallas_call(
        kernel,
        out_shape=out_shapes,
        grid_spec=grid_spec,
        compiler_params=pltpu.CompilerParams(
            dimension_semantics=("parallel",)),   # >=2 parallel steps for v7x 2xTC
    )(q, k, v, gamma, beta, wq, bq, wk, bk, wv, bv, fcw, fcb)

    attn = attn_slab.reshape(sz_b, len_q, n_head, len_k).transpose(0, 2, 1, 3)
    return out, attn


def init_params(key, *, n_head, d_model, d_k, d_v):
    """Deterministic synthetic parameters mirroring the PyTorch init scheme."""
    ks = jax.random.split(key, 8)
    std_qk = np.sqrt(2.0 / (d_model + d_k))
    std_v = np.sqrt(2.0 / (d_model + d_v))
    std_fc = np.sqrt(2.0 / (d_model + n_head * d_v))  # xavier_normal_

    gamma = jnp.ones((1, d_model), jnp.float32)
    beta = jnp.zeros((1, d_model), jnp.float32)
    # Stored pre-transposed: x @ W gives the Linear output.
    wq = std_qk * jax.random.normal(ks[0], (d_model, n_head * d_k), jnp.float32)
    wk = std_qk * jax.random.normal(ks[1], (d_model, n_head * d_k), jnp.float32)
    wv = std_v * jax.random.normal(ks[2], (d_model, n_head * d_v), jnp.float32)
    bq = 0.01 * jax.random.normal(ks[3], (1, n_head * d_k), jnp.float32)
    bk = 0.01 * jax.random.normal(ks[4], (1, n_head * d_k), jnp.float32)
    bv = 0.01 * jax.random.normal(ks[5], (1, n_head * d_v), jnp.float32)
    fcw = std_fc * jax.random.normal(ks[6], (n_head * d_v, d_model), jnp.float32)
    fcb = 0.01 * jax.random.normal(ks[7], (1, d_model), jnp.float32)
    return (gamma, beta, wq, bq, wk, bk, wv, bv, fcw, fcb)


def reference_mha(q, k, v, params, *, n_head, d_k, d_v):
    """Pure-JAX reference matching the PyTorch forward (eval mode).

    All contractions use Precision.HIGHEST so the reference itself does not
    carry default-precision (bf16-pass) MXU noise.
    """
    gamma, beta, wq, bq, wk, bk, wv, bv, fcw, fcb = params
    sz_b, len_q, d_model = q.shape

    def ln(x):
        m = jnp.mean(x, axis=-1, keepdims=True)
        var = jnp.mean((x - m) ** 2, axis=-1, keepdims=True)
        return (x - m) / jnp.sqrt(var + 1e-5) * gamma[0] + beta[0]

    residual = q
    qp = (jnp.dot(ln(q), wq, precision=_HI) + bq[0]
          ).reshape(sz_b, len_q, n_head, d_k).transpose(0, 2, 1, 3)
    kp = (jnp.dot(ln(k), wk, precision=_HI) + bk[0]
          ).reshape(sz_b, -1, n_head, d_k).transpose(0, 2, 1, 3)
    vp = (jnp.dot(ln(v), wv, precision=_HI) + bv[0]
          ).reshape(sz_b, -1, n_head, d_v).transpose(0, 2, 1, 3)
    scores = jnp.einsum("bhqd,bhkd->bhqk", qp, kp, precision=_HI) / (d_k ** 0.5)
    attn = jax.nn.softmax(scores, axis=-1)
    out = jnp.einsum("bhqk,bhkd->bhqd", attn, vp, precision=_HI)
    out = out.transpose(0, 2, 1, 3).reshape(sz_b, len_q, n_head * d_v)
    out = jnp.dot(out, fcw, precision=_HI) + fcb[0] + residual
    return out, attn


if __name__ == "__main__":
    n_head, d_model, d_k, d_v = 4, 32, 8, 8
    batch, seq = 2, 8

    key = jax.random.PRNGKey(0)
    kq, kk, kv, kp = jax.random.split(key, 4)
    q = jax.random.normal(kq, (batch, seq, d_model), jnp.float32)
    k = jax.random.normal(kk, (batch, seq, d_model), jnp.float32)
    v = jax.random.normal(kv, (batch, seq, d_model), jnp.float32)
    params = init_params(kp, n_head=n_head, d_model=d_model, d_k=d_k, d_v=d_v)

    # Tolerances: the in-kernel f32 matmuls may run at the TPU's *default*
    # matmul precision (single-pass bf16 operands on the MXU, ~2^-8 relative
    # error), e.g. when the kernel body is executed by the interpreter.  The
    # reference is computed at Precision.HIGHEST, so allow a few 1e-2.
    OUT_TOL = dict(atol=3e-2, rtol=3e-2)
    ATTN_TOL = dict(atol=2e-2, rtol=2e-2)

    # Cross-attention (distinct q/k/v).
    out, attn = multi_head_attention(q, k, v, params,
                                     n_head=n_head, d_k=d_k, d_v=d_v)
    jax.block_until_ready((out, attn))

    ref_out, ref_attn = reference_mha(q, k, v, params,
                                      n_head=n_head, d_k=d_k, d_v=d_v)
    out_np, ref_out_np = np.asarray(out), np.asarray(ref_out)
    attn_np, ref_attn_np = np.asarray(attn), np.asarray(ref_attn)
    assert np.allclose(out_np, ref_out_np, **OUT_TOL), (
        f"out mismatch: max abs diff {np.max(np.abs(out_np - ref_out_np)):.3e}")
    assert np.allclose(attn_np, ref_attn_np, **ATTN_TOL), (
        f"attn mismatch: max abs diff {np.max(np.abs(attn_np - ref_attn_np)):.3e}")

    # Self-attention path (shared LayerNorm fast path).
    out_s, attn_s = multi_head_attention(q, q, q, params,
                                         n_head=n_head, d_k=d_k, d_v=d_v)
    jax.block_until_ready((out_s, attn_s))
    ref_out_s, ref_attn_s = reference_mha(q, q, q, params,
                                          n_head=n_head, d_k=d_k, d_v=d_v)
    out_s_np, ref_out_s_np = np.asarray(out_s), np.asarray(ref_out_s)
    attn_s_np, ref_attn_s_np = np.asarray(attn_s), np.asarray(ref_attn_s)
    assert np.allclose(out_s_np, ref_out_s_np, **OUT_TOL), (
        f"self out mismatch: max abs diff {np.max(np.abs(out_s_np - ref_out_s_np)):.3e}")
    assert np.allclose(attn_s_np, ref_attn_s_np, **ATTN_TOL), (
        f"self attn mismatch: max abs diff {np.max(np.abs(attn_s_np - ref_attn_s_np)):.3e}")

    print("KERNEL_OK")
</pallas_src>

<mosaic_0001>
module attributes {stable_mosaic.version = 11 : i64} {
  func.func @_mha_kernel(%arg0: i32, %arg1: memref<1x8x32xf32, #tpu.memory_space<vmem>>, %arg2: memref<1x8x32xf32, #tpu.memory_space<vmem>>, %arg3: memref<1x8x32xf32, #tpu.memory_space<vmem>>, %arg4: memref<1x32xf32, #tpu.memory_space<vmem>>, %arg5: memref<1x32xf32, #tpu.memory_space<vmem>>, %arg6: memref<32x32xf32, #tpu.memory_space<vmem>>, %arg7: memref<1x32xf32, #tpu.memory_space<vmem>>, %arg8: memref<32x32xf32, #tpu.memory_space<vmem>>, %arg9: memref<1x32xf32, #tpu.memory_space<vmem>>, %arg10: memref<32x32xf32, #tpu.memory_space<vmem>>, %arg11: memref<1x32xf32, #tpu.memory_space<vmem>>, %arg12: memref<32x32xf32, #tpu.memory_space<vmem>>, %arg13: memref<1x32xf32, #tpu.memory_space<vmem>>, %arg14: memref<1x8x32xf32, #tpu.memory_space<vmem>>, %arg15: memref<1x8x32xf32, #tpu.memory_space<vmem>>) attributes {dimension_semantics = [#tpu.dimension_semantics<parallel>], iteration_bounds = array<i64: 2>, scalar_prefetch = 0 : i64, scratch_operands = 0 : i64, tpu.core_type = #tpu.core_type<tc>, window_params = [{transform_indices = @transform_0, window_bounds = array<i64: 1, 8, 32>}, {transform_indices = @transform_1, window_bounds = array<i64: 1, 8, 32>}, {transform_indices = @transform_2, window_bounds = array<i64: 1, 8, 32>}, {pipeline_mode = #tpu.pipeline_mode<synchronous>, transform_indices = @transform_3, window_bounds = array<i64: 1, 32>}, {pipeline_mode = #tpu.pipeline_mode<synchronous>, transform_indices = @transform_4, window_bounds = array<i64: 1, 32>}, {pipeline_mode = #tpu.pipeline_mode<synchronous>, transform_indices = @transform_5, window_bounds = array<i64: 32, 32>}, {pipeline_mode = #tpu.pipeline_mode<synchronous>, transform_indices = @transform_6, window_bounds = array<i64: 1, 32>}, {pipeline_mode = #tpu.pipeline_mode<synchronous>, transform_indices = @transform_7, window_bounds = array<i64: 32, 32>}, {pipeline_mode = #tpu.pipeline_mode<synchronous>, transform_indices = @transform_8, window_bounds = array<i64: 1, 32>}, {pipeline_mode = #tpu.pipeline_mode<synchronous>, transform_indices = @transform_9, window_bounds = array<i64: 32, 32>}, {pipeline_mode = #tpu.pipeline_mode<synchronous>, transform_indices = @transform_10, window_bounds = array<i64: 1, 32>}, {pipeline_mode = #tpu.pipeline_mode<synchronous>, transform_indices = @transform_11, window_bounds = array<i64: 32, 32>}, {pipeline_mode = #tpu.pipeline_mode<synchronous>, transform_indices = @transform_12, window_bounds = array<i64: 1, 32>}, {transform_indices = @transform_13, window_bounds = array<i64: 1, 8, 32>}, {transform_indices = @transform_14, window_bounds = array<i64: 1, 8, 32>}]} {
    %c0 = arith.constant 0 : index
    %c0_0 = arith.constant 0 : index
    %c0_1 = arith.constant 0 : index
    %0 = vector.load %arg1[%c0, %c0_0, %c0_1] : memref<1x8x32xf32, #tpu.memory_space<vmem>>, vector<1x8x32xf32>
    %1 = vector.shape_cast %0 : vector<1x8x32xf32> to vector<8x32xf32>
    %c0_2 = arith.constant 0 : index
    %c0_3 = arith.constant 0 : index
    %c0_4 = arith.constant 0 : index
    %2 = vector.load %arg2[%c0_2, %c0_3, %c0_4] : memref<1x8x32xf32, #tpu.memory_space<vmem>>, vector<1x8x32xf32>
    %3 = vector.shape_cast %2 : vector<1x8x32xf32> to vector<8x32xf32>
    %c0_5 = arith.constant 0 : index
    %c0_6 = arith.constant 0 : index
    %c0_7 = arith.constant 0 : index
    %4 = vector.load %arg3[%c0_5, %c0_6, %c0_7] : memref<1x8x32xf32, #tpu.memory_space<vmem>>, vector<1x8x32xf32>
    %5 = vector.shape_cast %4 : vector<1x8x32xf32> to vector<8x32xf32>
    %c0_8 = arith.constant 0 : index
    %c0_9 = arith.constant 0 : index
    %6 = vector.load %arg4[%c0_8, %c0_9] : memref<1x32xf32, #tpu.memory_space<vmem>>, vector<1x32xf32>
    %c0_10 = arith.constant 0 : index
    %c0_11 = arith.constant 0 : index
    %7 = vector.load %arg5[%c0_10, %c0_11] : memref<1x32xf32, #tpu.memory_space<vmem>>, vector<1x32xf32>
    %cst = arith.constant dense<0.000000e+00> : vector<8xf32>
    %8 = vector.multi_reduction <add>, %1, %cst [1] : vector<8x32xf32> to vector<8xf32>
    %9 = vector.shape_cast %8 : vector<8xf32> to vector<8x1xf32>
    %cst_12 = arith.constant 3.200000e+01 : f32
    %10 = vector.broadcast %cst_12 : f32 to vector<8x1xf32>
    %11 = arith.divf %9, %10 : vector<8x1xf32>
    %12 = vector.broadcast %11 : vector<8x1xf32> to vector<8x32xf32>
    %13 = arith.subf %1, %12 : vector<8x32xf32>
    %14 = arith.mulf %13, %13 : vector<8x32xf32>
    %cst_13 = arith.constant dense<0.000000e+00> : vector<8xf32>
    %15 = vector.multi_reduction <add>, %14, %cst_13 [1] : vector<8x32xf32> to vector<8xf32>
    %16 = vector.shape_cast %15 : vector<8xf32> to vector<8x1xf32>
    %cst_14 = arith.constant 3.200000e+01 : f32
    %17 = vector.broadcast %cst_14 : f32 to vector<8x1xf32>
    %18 = arith.divf %16, %17 : vector<8x1xf32>
    %19 = vector.broadcast %11 : vector<8x1xf32> to vector<8x32xf32>
    %20 = arith.subf %1, %19 : vector<8x32xf32>
    %cst_15 = arith.constant 9.99999974E-6 : f32
    %21 = vector.broadcast %cst_15 : f32 to vector<8x1xf32>
    %22 = arith.addf %18, %21 : vector<8x1xf32>
    %23 = math.rsqrt %22 : vector<8x1xf32>
    %24 = vector.broadcast %23 : vector<8x1xf32> to vector<8x32xf32>
    %25 = arith.mulf %20, %24 : vector<8x32xf32>
    %26 = vector.broadcast %6 : vector<1x32xf32> to vector<8x32xf32>
    %27 = arith.mulf %25, %26 : vector<8x32xf32>
    %28 = vector.broadcast %7 : vector<1x32xf32> to vector<8x32xf32>
    %29 = arith.addf %27, %28 : vector<8x32xf32>
    %cst_16 = arith.constant dense<0.000000e+00> : vector<8xf32>
    %30 = vector.multi_reduction <add>, %3, %cst_16 [1] : vector<8x32xf32> to vector<8xf32>
    %31 = vector.shape_cast %30 : vector<8xf32> to vector<8x1xf32>
    %cst_17 = arith.constant 3.200000e+01 : f32
    %32 = vector.broadcast %cst_17 : f32 to vector<8x1xf32>
    %33 = arith.divf %31, %32 : vector<8x1xf32>
    %34 = vector.broadcast %33 : vector<8x1xf32> to vector<8x32xf32>
    %35 = arith.subf %3, %34 : vector<8x32xf32>
    %36 = arith.mulf %35, %35 : vector<8x32xf32>
    %cst_18 = arith.constant dense<0.000000e+00> : vector<8xf32>
    %37 = vector.multi_reduction <add>, %36, %cst_18 [1] : vector<8x32xf32> to vector<8xf32>
    %38 = vector.shape_cast %37 : vector<8xf32> to vector<8x1xf32>
    %cst_19 = arith.constant 3.200000e+01 : f32
    %39 = vector.broadcast %cst_19 : f32 to vector<8x1xf32>
    %40 = arith.divf %38, %39 : vector<8x1xf32>
    %41 = vector.broadcast %33 : vector<8x1xf32> to vector<8x32xf32>
    %42 = arith.subf %3, %41 : vector<8x32xf32>
    %cst_20 = arith.constant 9.99999974E-6 : f32
    %43 = vector.broadcast %cst_20 : f32 to vector<8x1xf32>
    %44 = arith.addf %40, %43 : vector<8x1xf32>
    %45 = math.rsqrt %44 : vector<8x1xf32>
    %46 = vector.broadcast %45 : vector<8x1xf32> to vector<8x32xf32>
    %47 = arith.mulf %42, %46 : vector<8x32xf32>
    %48 = vector.broadcast %6 : vector<1x32xf32> to vector<8x32xf32>
    %49 = arith.mulf %47, %48 : vector<8x32xf32>
    %50 = vector.broadcast %7 : vector<1x32xf32> to vector<8x32xf32>
    %51 = arith.addf %49, %50 : vector<8x32xf32>
    %cst_21 = arith.constant dense<0.000000e+00> : vector<8xf32>
    %52 = vector.multi_reduction <add>, %5, %cst_21 [1] : vector<8x32xf32> to vector<8xf32>
    %53 = vector.shape_cast %52 : vector<8xf32> to vector<8x1xf32>
    %cst_22 = arith.constant 3.200000e+01 : f32
    %54 = vector.broadcast %cst_22 : f32 to vector<8x1xf32>
    %55 = arith.divf %53, %54 : vector<8x1xf32>
    %56 = vector.broadcast %55 : vector<8x1xf32> to vector<8x32xf32>
    %57 = arith.subf %5, %56 : vector<8x32xf32>
    %58 = arith.mulf %57, %57 : vector<8x32xf32>
    %cst_23 = arith.constant dense<0.000000e+00> : vector<8xf32>
    %59 = vector.multi_reduction <add>, %58, %cst_23 [1] : vector<8x32xf32> to vector<8xf32>
    %60 = vector.shape_cast %59 : vector<8xf32> to vector<8x1xf32>
    %cst_24 = arith.constant 3.200000e+01 : f32
    %61 = vector.broadcast %cst_24 : f32 to vector<8x1xf32>
    %62 = arith.divf %60, %61 : vector<8x1xf32>
    %63 = vector.broadcast %55 : vector<8x1xf32> to vector<8x32xf32>
    %64 = arith.subf %5, %63 : vector<8x32xf32>
    %cst_25 = arith.constant 9.99999974E-6 : f32
    %65 = vector.broadcast %cst_25 : f32 to vector<8x1xf32>
    %66 = arith.addf %62, %65 : vector<8x1xf32>
    %67 = math.rsqrt %66 : vector<8x1xf32>
    %68 = vector.broadcast %67 : vector<8x1xf32> to vector<8x32xf32>
    %69 = arith.mulf %64, %68 : vector<8x32xf32>
    %70 = vector.broadcast %6 : vector<1x32xf32> to vector<8x32xf32>
    %71 = arith.mulf %69, %70 : vector<8x32xf32>
    %72 = vector.broadcast %7 : vector<1x32xf32> to vector<8x32xf32>
    %73 = arith.addf %71, %72 : vector<8x32xf32>
    %c0_26 = arith.constant 0 : index
    %c0_27 = arith.constant 0 : index
    %74 = vector.load %arg6[%c0_26, %c0_27] : memref<32x32xf32, #tpu.memory_space<vmem>>, vector<32x32xf32>
    %cst_28 = arith.constant dense<0.000000e+00> : vector<8x32xf32>
    %75 = tpu.matmul %29, %74, %cst_28 {dimension_numbers = #tpu.dot_dimension_numbers<[1], [0], [0], [1], [0, 0, 1, 1], [], []>} : vector<8x32xf32>, vector<32x32xf32>, vector<8x32xf32> -> vector<8x32xf32>
    %c0_29 = arith.constant 0 : index
    %c0_30 = arith.constant 0 : index
    %76 = vector.load %arg7[%c0_29, %c0_30] : memref<1x32xf32, #tpu.memory_space<vmem>>, vector<1x32xf32>
    %77 = vector.broadcast %76 : vector<1x32xf32> to vector<8x32xf32>
    %78 = arith.addf %75, %77 : vector<8x32xf32>
    %cst_31 = arith.constant 0.353553385 : f32
    %79 = vector.broadcast %cst_31 : f32 to vector<8x32xf32>
    %80 = arith.mulf %78, %79 : vector<8x32xf32>
    %c0_32 = arith.constant 0 : index
    %c0_33 = arith.constant 0 : index
    %81 = vector.load %arg8[%c0_32, %c0_33] : memref<32x32xf32, #tpu.memory_space<vmem>>, vector<32x32xf32>
    %cst_34 = arith.constant dense<0.000000e+00> : vector<8x32xf32>
    %82 = tpu.matmul %51, %81, %cst_34 {dimension_numbers = #tpu.dot_dimension_numbers<[1], [0], [0], [1], [0, 0, 1, 1], [], []>} : vector<8x32xf32>, vector<32x32xf32>, vector<8x32xf32> -> vector<8x32xf32>
    %c0_35 = arith.constant 0 : index
    %c0_36 = arith.constant 0 : index
    %83 = vector.load %arg9[%c0_35, %c0_36] : memref<1x32xf32, #tpu.memory_space<vmem>>, vector<1x32xf32>
    %84 = vector.broadcast %83 : vector<1x32xf32> to vector<8x32xf32>
    %85 = arith.addf %82, %84 : vector<8x32xf32>
    %c0_37 = arith.constant 0 : index
    %c0_38 = arith.constant 0 : index
    %86 = vector.load %arg10[%c0_37, %c0_38] : memref<32x32xf32, #tpu.memory_space<vmem>>, vector<32x32xf32>
    %cst_39 = arith.constant dense<0.000000e+00> : vector<8x32xf32>
    %87 = tpu.matmul %73, %86, %cst_39 {dimension_numbers = #tpu.dot_dimension_numbers<[1], [0], [0], [1], [0, 0, 1, 1], [], []>} : vector<8x32xf32>, vector<32x32xf32>, vector<8x32xf32> -> vector<8x32xf32>
    %c0_40 = arith.constant 0 : index
    %c0_41 = arith.constant 0 : index
    %88 = vector.load %arg11[%c0_40, %c0_41] : memref<1x32xf32, #tpu.memory_space<vmem>>, vector<1x32xf32>
    %89 = vector.broadcast %88 : vector<1x32xf32> to vector<8x32xf32>
    %90 = arith.addf %87, %89 : vector<8x32xf32>
    %91 = vector.extract_strided_slice %80 {offsets = [0, 0], sizes = [8, 8], strides = [1, 1]} : vector<8x32xf32> to vector<8x8xf32>
    %92 = vector.extract_strided_slice %85 {offsets = [0, 0], sizes = [8, 8], strides = [1, 1]} : vector<8x32xf32> to vector<8x8xf32>
    %93 = vector.extract_strided_slice %90 {offsets = [0, 0], sizes = [8, 8], strides = [1, 1]} : vector<8x32xf32> to vector<8x8xf32>
    %cst_42 = arith.constant dense<0.000000e+00> : vector<8x8xf32>
    %94 = tpu.matmul %91, %92, %cst_42 {dimension_numbers = #tpu.dot_dimension_numbers<[1], [1], [0], [0], [0, 0, 1, 0], [], []>} : vector<8x8xf32>, vector<8x8xf32>, vector<8x8xf32> -> vector<8x8xf32>
    %cst_43 = arith.constant dense<0xFF800000> : vector<8xf32>
    %95 = vector.multi_reduction <maximumf>, %94, %cst_43 [1] : vector<8x8xf32> to vector<8xf32>
    %96 = vector.shape_cast %95 : vector<8xf32> to vector<8x1xf32>
    %97 = vector.broadcast %96 : vector<8x1xf32> to vector<8x8xf32>
    %98 = arith.subf %94, %97 : vector<8x8xf32>
    %99 = math.exp %98 : vector<8x8xf32>
    %cst_44 = arith.constant dense<0.000000e+00> : vector<8xf32>
    %100 = vector.multi_reduction <add>, %99, %cst_44 [1] : vector<8x8xf32> to vector<8xf32>
    %101 = vector.shape_cast %100 : vector<8xf32> to vector<8x1xf32>
    %102 = tpu.reciprocal %101 {approx = true} : vector<8x1xf32> -> vector<8x1xf32>
    %103 = vector.broadcast %102 : vector<8x1xf32> to vector<8x8xf32>
    %104 = arith.mulf %99, %103 : vector<8x8xf32>
    %cst_45 = arith.constant dense<0.000000e+00> : vector<8x8xf32>
    %105 = tpu.matmul %104, %93, %cst_45 {dimension_numbers = #tpu.dot_dimension_numbers<[1], [0], [0], [1], [0, 0, 1, 1], [], []>} : vector<8x8xf32>, vector<8x8xf32>, vector<8x8xf32> -> vector<8x8xf32>
    %106 = vector.extract_strided_slice %80 {offsets = [0, 8], sizes = [8, 8], strides = [1, 1]} : vector<8x32xf32> to vector<8x8xf32>
    %107 = vector.extract_strided_slice %85 {offsets = [0, 8], sizes = [8, 8], strides = [1, 1]} : vector<8x32xf32> to vector<8x8xf32>
    %108 = vector.extract_strided_slice %90 {offsets = [0, 8], sizes = [8, 8], strides = [1, 1]} : vector<8x32xf32> to vector<8x8xf32>
    %cst_46 = arith.constant dense<0.000000e+00> : vector<8x8xf32>
    %109 = tpu.matmul %106, %107, %cst_46 {dimension_numbers = #tpu.dot_dimension_numbers<[1], [1], [0], [0], [0, 0, 1, 0], [], []>} : vector<8x8xf32>, vector<8x8xf32>, vector<8x8xf32> -> vector<8x8xf32>
    %cst_47 = arith.constant dense<0xFF800000> : vector<8xf32>
    %110 = vector.multi_reduction <maximumf>, %109, %cst_47 [1] : vector<8x8xf32> to vector<8xf32>
    %111 = vector.shape_cast %110 : vector<8xf32> to vector<8x1xf32>
    %112 = vector.broadcast %111 : vector<8x1xf32> to vector<8x8xf32>
    %113 = arith.subf %109, %112 : vector<8x8xf32>
    %114 = math.exp %113 : vector<8x8xf32>
    %cst_48 = arith.constant dense<0.000000e+00> : vector<8xf32>
    %115 = vector.multi_reduction <add>, %114, %cst_48 [1] : vector<8x8xf32> to vector<8xf32>
    %116 = vector.shape_cast %115 : vector<8xf32> to vector<8x1xf32>
    %117 = tpu.reciprocal %116 {approx = true} : vector<8x1xf32> -> vector<8x1xf32>
    %118 = vector.broadcast %117 : vector<8x1xf32> to vector<8x8xf32>
    %119 = arith.mulf %114, %118 : vector<8x8xf32>
    %cst_49 = arith.constant dense<0.000000e+00> : vector<8x8xf32>
    %120 = tpu.matmul %119, %108, %cst_49 {dimension_numbers = #tpu.dot_dimension_numbers<[1], [0], [0], [1], [0, 0, 1, 1], [], []>} : vector<8x8xf32>, vector<8x8xf32>, vector<8x8xf32> -> vector<8x8xf32>
    %121 = vector.extract_strided_slice %80 {offsets = [0, 16], sizes = [8, 8], strides = [1, 1]} : vector<8x32xf32> to vector<8x8xf32>
    %122 = vector.extract_strided_slice %85 {offsets = [0, 16], sizes = [8, 8], strides = [1, 1]} : vector<8x32xf32> to vector<8x8xf32>
    %123 = vector.extract_strided_slice %90 {offsets = [0, 16], sizes = [8, 8], strides = [1, 1]} : vector<8x32xf32> to vector<8x8xf32>
    %cst_50 = arith.constant dense<0.000000e+00> : vector<8x8xf32>
    %124 = tpu.matmul %121, %122, %cst_50 {dimension_numbers = #tpu.dot_dimension_numbers<[1], [1], [0], [0], [0, 0, 1, 0], [], []>} : vector<8x8xf32>, vector<8x8xf32>, vector<8x8xf32> -> vector<8x8xf32>
    %cst_51 = arith.constant dense<0xFF800000> : vector<8xf32>
    %125 = vector.multi_reduction <maximumf>, %124, %cst_51 [1] : vector<8x8xf32> to vector<8xf32>
    %126 = vector.shape_cast %125 : vector<8xf32> to vector<8x1xf32>
    %127 = vector.broadcast %126 : vector<8x1xf32> to vector<8x8xf32>
    %128 = arith.subf %124, %127 : vector<8x8xf32>
    %129 = math.exp %128 : vector<8x8xf32>
    %cst_52 = arith.constant dense<0.000000e+00> : vector<8xf32>
    %130 = vector.multi_reduction <add>, %129, %cst_52 [1] : vector<8x8xf32> to vector<8xf32>
    %131 = vector.shape_cast %130 : vector<8xf32> to vector<8x1xf32>
    %132 = tpu.reciprocal %131 {approx = true} : vector<8x1xf32> -> vector<8x1xf32>
    %133 = vector.broadcast %132 : vector<8x1xf32> to vector<8x8xf32>
    %134 = arith.mulf %129, %133 : vector<8x8xf32>
    %cst_53 = arith.constant dense<0.000000e+00> : vector<8x8xf32>
    %135 = tpu.matmul %134, %123, %cst_53 {dimension_numbers = #tpu.dot_dimension_numbers<[1], [0], [0], [1], [0, 0, 1, 1], [], []>} : vector<8x8xf32>, vector<8x8xf32>, vector<8x8xf32> -> vector<8x8xf32>
    %136 = vector.extract_strided_slice %80 {offsets = [0, 24], sizes = [8, 8], strides = [1, 1]} : vector<8x32xf32> to vector<8x8xf32>
    %137 = vector.extract_strided_slice %85 {offsets = [0, 24], sizes = [8, 8], strides = [1, 1]} : vector<8x32xf32> to vector<8x8xf32>
    %138 = vector.extract_strided_slice %90 {offsets = [0, 24], sizes = [8, 8], strides = [1, 1]} : vector<8x32xf32> to vector<8x8xf32>
    %cst_54 = arith.constant dense<0.000000e+00> : vector<8x8xf32>
    %139 = tpu.matmul %136, %137, %cst_54 {dimension_numbers = #tpu.dot_dimension_numbers<[1], [1], [0], [0], [0, 0, 1, 0], [], []>} : vector<8x8xf32>, vector<8x8xf32>, vector<8x8xf32> -> vector<8x8xf32>
    %cst_55 = arith.constant dense<0xFF800000> : vector<8xf32>
    %140 = vector.multi_reduction <maximumf>, %139, %cst_55 [1] : vector<8x8xf32> to vector<8xf32>
    %141 = vector.shape_cast %140 : vector<8xf32> to vector<8x1xf32>
    %142 = vector.broadcast %141 : vector<8x1xf32> to vector<8x8xf32>
    %143 = arith.subf %139, %142 : vector<8x8xf32>
    %144 = math.exp %143 : vector<8x8xf32>
    %cst_56 = arith.constant dense<0.000000e+00> : vector<8xf32>
    %145 = vector.multi_reduction <add>, %144, %cst_56 [1] : vector<8x8xf32> to vector<8xf32>
    %146 = vector.shape_cast %145 : vector<8xf32> to vector<8x1xf32>
    %147 = tpu.reciprocal %146 {approx = true} : vector<8x1xf32> -> vector<8x1xf32>
    %148 = vector.broadcast %147 : vector<8x1xf32> to vector<8x8xf32>
    %149 = arith.mulf %144, %148 : vector<8x8xf32>
    %cst_57 = arith.constant dense<0.000000e+00> : vector<8x8xf32>
    %150 = tpu.matmul %149, %138, %cst_57 {dimension_numbers = #tpu.dot_dimension_numbers<[1], [0], [0], [1], [0, 0, 1, 1], [], []>} : vector<8x8xf32>, vector<8x8xf32>, vector<8x8xf32> -> vector<8x8xf32>
    %151 = tpu.concatenate %104, %119, %134, %149 in 1 : vector<8x8xf32>, vector<8x8xf32>, vector<8x8xf32>, vector<8x8xf32> -> vector<8x32xf32>
    %c0_58 = arith.constant 0 : index
    %c0_59 = arith.constant 0 : index
    %c0_60 = arith.constant 0 : index
    %152 = vector.load %arg15[%c0_58, %c0_59, %c0_60] : memref<1x8x32xf32, #tpu.memory_space<vmem>>, vector<1x8x32xf32>
    %153 = vector.shape_cast %152 : vector<1x8x32xf32> to vector<8x32xf32>
    %154 = vector.shape_cast %151 : vector<8x32xf32> to vector<1x8x32xf32>
    tpu.vector_store %arg15[%c0_58, %c0_59, %c0_60], %154 {strides = array<i32>} : memref<1x8x32xf32, #tpu.memory_space<vmem>>, vector<1x8x32xf32>,
    %155 = tpu.concatenate %105, %120, %135, %150 in 1 : vector<8x8xf32>, vector<8x8xf32>, vector<8x8xf32>, vector<8x8xf32> -> vector<8x32xf32>
    %c0_61 = arith.constant 0 : index
    %c0_62 = arith.constant 0 : index
    %156 = vector.load %arg12[%c0_61, %c0_62] : memref<32x32xf32, #tpu.memory_space<vmem>>, vector<32x32xf32>
    %cst_63 = arith.constant dense<0.000000e+00> : vector<8x32xf32>
    %157 = tpu.matmul %155, %156, %cst_63 {dimension_numbers = #tpu.dot_dimension_numbers<[1], [0], [0], [1], [0, 0, 1, 1], [], []>} : vector<8x32xf32>, vector<32x32xf32>, vector<8x32xf32> -> vector<8x32xf32>
    %c0_64 = arith.constant 0 : index
    %c0_65 = arith.constant 0 : index
    %158 = vector.load %arg13[%c0_64, %c0_65] : memref<1x32xf32, #tpu.memory_space<vmem>>, vector<1x32xf32>
    %159 = vector.broadcast %158 : vector<1x32xf32> to vector<8x32xf32>
    %160 = arith.addf %157, %159 : vector<8x32xf32>
    %161 = arith.addf %160, %1 : vector<8x32xf32>
    %c0_66 = arith.constant 0 : index
    %c0_67 = arith.constant 0 : index
    %c0_68 = arith.constant 0 : index
    %162 = vector.load %arg14[%c0_66, %c0_67, %c0_68] : memref<1x8x32xf32, #tpu.memory_space<vmem>>, vector<1x8x32xf32>
    %163 = vector.shape_cast %162 : vector<1x8x32xf32> to vector<8x32xf32>
    %164 = vector.shape_cast %161 : vector<8x32xf32> to vector<1x8x32xf32>
    tpu.vector_store %arg14[%c0_66, %c0_67, %c0_68], %164 {strides = array<i32>} : memref<1x8x32xf32, #tpu.memory_space<vmem>>, vector<1x8x32xf32>,
    return
  }
  func.func @transform_0(%arg0: i32) -> (i32, i32, i32) {
    %c0_i32 = arith.constant 0 : i32
    %c0_i32_0 = arith.constant 0 : i32
    %c0_i32_1 = arith.constant 0 : i32
    return %arg0, %c0_i32, %c0_i32_0 : i32, i32, i32
  }
  func.func @transform_1(%arg0: i32) -> (i32, i32, i32) {
    %c0_i32 = arith.constant 0 : i32
    %c0_i32_0 = arith.constant 0 : i32
    %c0_i32_1 = arith.constant 0 : i32
    return %arg0, %c0_i32, %c0_i32_0 : i32, i32, i32
  }
  func.func @transform_2(%arg0: i32) -> (i32, i32, i32) {
    %c0_i32 = arith.constant 0 : i32
    %c0_i32_0 = arith.constant 0 : i32
    %c0_i32_1 = arith.constant 0 : i32
    return %arg0, %c0_i32, %c0_i32_0 : i32, i32, i32
  }
  func.func @transform_3(%arg0: i32) -> (i32, i32) {
    %c0_i32 = arith.constant 0 : i32
    %c0_i32_0 = arith.constant 0 : i32
    %c0_i32_1 = arith.constant 0 : i32
    return %c0_i32, %c0_i32_0 : i32, i32
  }
  func.func @transform_4(%arg0: i32) -> (i32, i32) {
    %c0_i32 = arith.constant 0 : i32
    %c0_i32_0 = arith.constant 0 : i32
    %c0_i32_1 = arith.constant 0 : i32
    return %c0_i32, %c0_i32_0 : i32, i32
  }
  func.func @transform_5(%arg0: i32) -> (i32, i32) {
    %c0_i32 = arith.constant 0 : i32
    %c0_i32_0 = arith.constant 0 : i32
    %c0_i32_1 = arith.constant 0 : i32
    return %c0_i32, %c0_i32_0 : i32, i32
  }
  func.func @transform_6(%arg0: i32) -> (i32, i32) {
    %c0_i32 = arith.constant 0 : i32
    %c0_i32_0 = arith.constant 0 : i32
    %c0_i32_1 = arith.constant 0 : i32
    return %c0_i32, %c0_i32_0 : i32, i32
  }
  func.func @transform_7(%arg0: i32) -> (i32, i32) {
    %c0_i32 = arith.constant 0 : i32
    %c0_i32_0 = arith.constant 0 : i32
    %c0_i32_1 = arith.constant 0 : i32
    return %c0_i32, %c0_i32_0 : i32, i32
  }
  func.func @transform_8(%arg0: i32) -> (i32, i32) {
    %c0_i32 = arith.constant 0 : i32
    %c0_i32_0 = arith.constant 0 : i32
    %c0_i32_1 = arith.constant 0 : i32
    return %c0_i32, %c0_i32_0 : i32, i32
  }
  func.func @transform_9(%arg0: i32) -> (i32, i32) {
    %c0_i32 = arith.constant 0 : i32
    %c0_i32_0 = arith.constant 0 : i32
    %c0_i32_1 = arith.constant 0 : i32
    return %c0_i32, %c0_i32_0 : i32, i32
  }
  func.func @transform_10(%arg0: i32) -> (i32, i32) {
    %c0_i32 = arith.constant 0 : i32
    %c0_i32_0 = arith.constant 0 : i32
    %c0_i32_1 = arith.constant 0 : i32
    return %c0_i32, %c0_i32_0 : i32, i32
  }
  func.func @transform_11(%arg0: i32) -> (i32, i32) {
    %c0_i32 = arith.constant 0 : i32
    %c0_i32_0 = arith.constant 0 : i32
    %c0_i32_1 = arith.constant 0 : i32
    return %c0_i32, %c0_i32_0 : i32, i32
  }
  func.func @transform_12(%arg0: i32) -> (i32, i32) {
    %c0_i32 = arith.constant 0 : i32
    %c0_i32_0 = arith.constant 0 : i32
    %c0_i32_1 = arith.constant 0 : i32
    return %c0_i32, %c0_i32_0 : i32, i32
  }
  func.func @transform_13(%arg0: i32) -> (i32, i32, i32) {
    %c0_i32 = arith.constant 0 : i32
    %c0_i32_0 = arith.constant 0 : i32
    %c0_i32_1 = arith.constant 0 : i32
    return %arg0, %c0_i32, %c0_i32_0 : i32, i32, i32
  }
  func.func @transform_14(%arg0: i32) -> (i32, i32, i32) {
    %c0_i32 = arith.constant 0 : i32
    %c0_i32_0 = arith.constant 0 : i32
    %c0_i32_1 = arith.constant 0 : i32
    return %arg0, %c0_i32, %c0_i32_0 : i32, i32, i32
  }
}

</mosaic_0001>

<llo_original>
// kernel: tpu_custom_call.1
$region0: #{tpu_custom_call.1}
  #allocation0 [shape = 'u32[]', space=smem, size = 0x4, offset = 0x4, fixed_abs, tag = 'smem constant byte address 0x4 - core index']
  #allocation1 [shape = 'u32[72,128]{1,0:T(1,128)}', space=vmem, size = 0x9000, scoped, tag = 'internal scratch']
  %s0 = inlined_call_operand.hbm [shape: f32[2,8,32], index: 0, kind: input, shape index: {}]
  %s1 = inlined_call_operand.hbm [shape: f32[2,8,32], index: 1, kind: input, shape index: {}]
  %s2 = inlined_call_operand.hbm [shape: f32[2,8,32], index: 2, kind: input, shape index: {}]
  %s3 = inlined_call_operand.vmem [shape: f32[1,32], index: 3, kind: input, shape index: {}]
  %s4 = inlined_call_operand.vmem [shape: f32[1,32], index: 4, kind: input, shape index: {}]
  %s5 = inlined_call_operand.hbm [shape: f32[32,32], index: 5, kind: input, shape index: {}]
  %s6 = inlined_call_operand.vmem [shape: f32[1,32], index: 6, kind: input, shape index: {}]
  %s7 = inlined_call_operand.hbm [shape: f32[32,32], index: 7, kind: input, shape index: {}]
  %s8 = inlined_call_operand.vmem [shape: f32[1,32], index: 8, kind: input, shape index: {}]
  %s9 = inlined_call_operand.hbm [shape: f32[32,32], index: 9, kind: input, shape index: {}]
  %s10 = inlined_call_operand.vmem [shape: f32[1,32], index: 10, kind: input, shape index: {}]
  %s11 = inlined_call_operand.hbm [shape: f32[32,32], index: 11, kind: input, shape index: {}]
  %s12 = inlined_call_operand.vmem [shape: f32[1,32], index: 12, kind: input, shape index: {}]
  %s13 = inlined_call_operand.hbm [shape: f32[2,8,32], index: 13, kind: output, shape index: {0}]
  %s14 = inlined_call_operand.hbm [shape: f32[2,8,32], index: 14, kind: output, shape index: {1}]
  %15 = xla_tuple %s13, %s14
  %s16 = sld [smem:[#allocation0]]
  $region121: #{tpu_custom_call.1} parent=0
    _
  %s18 = ssub.s32 1, %s16
  %s19 = scalar_select 0, %s18, %s16
  $region1: #{tpu_custom_call.1} parent=0
    #allocation2 [shape = 'u8[8192]{0}', space=vmem, size = 0x2000, scoped, tag = 'input window, operand 0']
    #allocation3 [shape = 's32[2]{0}', space=sflag, size = 0x8, scoped, tag = 'scoped memory for tpu_custom_call.1']
    #allocation4 [shape = 's32[2]{0}', space=sflag, size = 0x8, scoped, tag = 'scoped memory for tpu_custom_call.1']
    #allocation5 [shape = 'u8[8192]{0}', space=vmem, size = 0x2000, scoped, tag = 'input window, operand 1']
    #allocation6 [shape = 's32[2]{0}', space=sflag, size = 0x8, scoped, tag = 'scoped memory for tpu_custom_call.1']
    #allocation7 [shape = 'u8[8192]{0}', space=vmem, size = 0x2000, scoped, tag = 'input window, operand 2']
    #allocation8 [shape = 'u8[16384]{0}', space=vmem, size = 0x4000, scoped, tag = 'input window, operand 5, single buffered']
    #allocation9 [shape = 's32[1]{0}', space=sflag, size = 0x4, scoped, tag = 'scoped memory for tpu_custom_call.1']
    #allocation10 [shape = 'u8[16384]{0}', space=vmem, size = 0x4000, scoped, tag = 'input window, operand 7, single buffered']
    #allocation11 [shape = 'u8[16384]{0}', space=vmem, size = 0x4000, scoped, tag = 'input window, operand 9, single buffered']
    #allocation12 [shape = 's32[1]{0}', space=sflag, size = 0x4, scoped, tag = 'scoped memory for tpu_custom_call.1']
    #allocation13 [shape = 'u8[16384]{0}', space=vmem, size = 0x4000, scoped, tag = 'input window, operand 11, single buffered']
    #allocation14 [shape = 'u8[8192]{0}', space=vmem, size = 0x2000, scoped, tag = 'output window, operand 0']
    #allocation15 [shape = 'u8[8192]{0}', space=vmem, size = 0x2000, scoped, tag = 'output window, operand 1']
    #allocation16 [shape = 's32[2]{0}', space=sflag, size = 0x8, scoped, tag = 'scoped memory for tpu_custom_call.1']
    %20 = vsyncpa [#allocation3], 0
    %s21 = scalar_lea.sflag [#allocation3], 1
    %22 = vsyncpa %s21, 0
    %23 = vsyncpa [#allocation6], 0
    %s24 = scalar_lea.sflag [#allocation6], 1
    %25 = vsyncpa %s24, 0
    %26 = vsyncpa [#allocation9], 0
    %27 = vsyncpa [#allocation12], 0
    %28 = vsyncpa [#allocation4], 0
    %s29 = scalar_lea.sflag [#allocation4], 1
    %30 = vsyncpa %s29, 0
    %31 = vsyncpa [#allocation16], 0
    %s32 = scalar_lea.sflag [#allocation16], 1
    %33 = vsyncpa %s32, 0
    loop: start=0, step=1, limit=4
    $region2: #{tpu_custom_call.1} parent=1 // loop_pre_header
      _
    $region3: #{tpu_custom_call.1} parent=1 // loop_header
      %s35 = sphi 0, %s39
      %p36 = scmp.ge.s32.totalorder %s35, 4
      %s45 = sphi 0, %s47
      %s48 = sphi 0, %s45
      %s49 = sphi 0, %s48
      %s65 = sphi 0, %s49
      %s71 = sphi 0, %s73
      %s74 = sphi 0, %s71
      %s75 = sphi 0, %s74
      %s91 = sphi 0, %s75
      %s97 = sphi 0, %s99
      %s100 = sphi 0, %s97
      %s101 = sphi 0, %s100
      %s117 = sphi 0, %s101
      %s121 = sphi 0, %s121
      %s123 = sphi 0, %s121
      %s124 = sphi 0, %s123
      %s138 = sphi 0, %s124
      %s142 = sphi 0, %s142
      %s144 = sphi 0, %s142
      %s145 = sphi 0, %s144
      %s159 = sphi 0, %s145
      %s163 = sphi 0, %s163
      %s165 = sphi 0, %s163
      %s166 = sphi 0, %s165
      %s180 = sphi 0, %s166
      %s184 = sphi 0, %s184
      %s186 = sphi 0, %s184
      %s187 = sphi 0, %s186
      %s201 = sphi 0, %s187
      %s205 = sphi 0, %s205
      %s207 = sphi 0, %s205
      %s208 = sphi 0, %s207
      %s222 = sphi 0, %s208
      %s226 = sphi 0, %s226
      %s228 = sphi 0, %s226
      %s229 = sphi 0, %s228
      %s243 = sphi 0, %s229
      %s247 = sphi 0, %s247
      %s249 = sphi 0, %s247
      %s250 = sphi 0, %s249
      %s264 = sphi 0, %s250
      %s268 = sphi 0, %s268
      %s270 = sphi 0, %s268
      %s271 = sphi 0, %s270
      %s285 = sphi 0, %s271
      %s289 = sphi 0, %s289
      %s291 = sphi 0, %s289
      %s292 = sphi 0, %s291
      %s306 = sphi 0, %s292
      %s310 = sphi 0, %s310
      %s312 = sphi 0, %s310
      %s313 = sphi 0, %s312
      %s327 = sphi 0, %s313
      %s333 = sphi 0, %s335
      %s336 = sphi 0, %s333
      %s337 = sphi 0, %s336
      %s353 = sphi 0, %s337
      %s359 = sphi 0, %s361
      %s362 = sphi 0, %s359
      %s363 = sphi 0, %s362
      %s379 = sphi 0, %s363
    $region4: #{tpu_custom_call.1} parent=1 // loop_header_branch
      %38 = sbr.rel (%p36) target = $region8
    $region5: #{tpu_custom_call.1} parent=1 // loop_body
      %s40 = ssub.s32 %s35, 1
      %s41 = ssub.s32 %s35, 2
      %s42 = sadd.s32 %s35, 1
      %s43 = ssub.s32 %s35, %s42
      %p44 = scmp.eq.s32.totalorder %s43, 0
      %s46 = sadd.s32 %s45, 1
      %s47 = scalar_select %p44, %s45, %s46
      %p50 = pneg %p44
      %p51 = scmp.eq.s32.totalorder %s35, 1
      %p52 = por %p50, %p51
      %p53 = scmp.ne.s32.totalorder %s45, %s48
      %p54 = scmp.eq.s32.totalorder %s35, 0
      %p55 = por %p53, %p54
      %p56 = scmp.ne.s32.totalorder %s45, %s48
      %p57 = scmp.eq.s32.totalorder %s40, 1
      %p58 = por %p56, %p57
      %p59 = scmp.ne.s32.totalorder %s48, %s49
      %p60 = scmp.eq.s32.totalorder %s40, 0
      %p61 = por %p59, %p60
      %p62 = scmp.ne.s32.totalorder %s48, %s49
      %p63 = scmp.eq.s32.totalorder %s41, 1
      %p64 = por %p62, %p63
      %p66 = scmp.ne.s32.totalorder %s49, %s65
      %p67 = scmp.eq.s32.totalorder %s41, 0
      %p68 = por %p66, %p67
      %s69 = ssub.s32 %s35, %s42
      %p70 = scmp.eq.s32.totalorder %s69, 0
      %s72 = sadd.s32 %s71, 1
      %s73 = scalar_select %p70, %s71, %s72
      %p76 = pneg %p70
      %p77 = scmp.eq.s32.totalorder %s35, 1
      %p78 = por %p76, %p77
      %p79 = scmp.ne.s32.totalorder %s71, %s74
      %p80 = scmp.eq.s32.totalorder %s35, 0
      %p81 = por %p79, %p80
      %p82 = scmp.ne.s32.totalorder %s71, %s74
      %p83 = scmp.eq.s32.totalorder %s40, 1
      %p84 = por %p82, %p83
      %p85 = scmp.ne.s32.totalorder %s74, %s75
      %p86 = scmp.eq.s32.totalorder %s40, 0
      %p87 = por %p85, %p86
      %p88 = scmp.ne.s32.totalorder %s74, %s75
      %p89 = scmp.eq.s32.totalorder %s41, 1
      %p90 = por %p88, %p89
      %p92 = scmp.ne.s32.totalorder %s75, %s91
      %p93 = scmp.eq.s32.totalorder %s41, 0
      %p94 = por %p92, %p93
      %s95 = ssub.s32 %s35, %s42
      %p96 = scmp.eq.s32.totalorder %s95, 0
      %s98 = sadd.s32 %s97, 1
      %s99 = scalar_select %p96, %s97, %s98
      %p102 = pneg %p96
      %p103 = scmp.eq.s32.totalorder %s35, 1
      %p104 = por %p102, %p103
      %p105 = scmp.ne.s32.totalorder %s97, %s100
      %p106 = scmp.eq.s32.totalorder %s35, 0
      %p107 = por %p105, %p106
      %p108 = scmp.ne.s32.totalorder %s97, %s100
      %p109 = scmp.eq.s32.totalorder %s40, 1
      %p110 = por %p108, %p109
      %p111 = scmp.ne.s32.totalorder %s100, %s101
      %p112 = scmp.eq.s32.totalorder %s40, 0
      %p113 = por %p111, %p112
      %p114 = scmp.ne.s32.totalorder %s100, %s101
      %p115 = scmp.eq.s32.totalorder %s41, 1
      %p116 = por %p114, %p115
      %p118 = scmp.ne.s32.totalorder %s101, %s117
      %p119 = scmp.eq.s32.totalorder %s41, 0
      %p120 = por %p118, %p119
      %s122 = sadd.s32 %s121, 1
      %p125 = scmp.eq.s32.totalorder %s35, 1
      %p126 = scmp.ne.s32.totalorder %s121, %s123
      %p127 = scmp.eq.s32.totalorder %s35, 0
      %p128 = por %p126, %p127
      %p129 = scmp.ne.s32.totalorder %s121, %s123
      %p130 = scmp.eq.s32.totalorder %s40, 1
      %p131 = por %p129, %p130
      %p132 = scmp.ne.s32.totalorder %s123, %s124
      %p133 = scmp.eq.s32.totalorder %s40, 0
      %p134 = por %p132, %p133
      %p135 = scmp.ne.s32.totalorder %s123, %s124
      %p136 = scmp.eq.s32.totalorder %s41, 1
      %p137 = por %p135, %p136
      %p139 = scmp.ne.s32.totalorder %s124, %s138
      %p140 = scmp.eq.s32.totalorder %s41, 0
      %p141 = por %p139, %p140
      %s143 = sadd.s32 %s142, 1
      %p146 = scmp.eq.s32.totalorder %s35, 1
      %p147 = scmp.ne.s32.totalorder %s142, %s144
      %p148 = scmp.eq.s32.totalorder %s35, 0
      %p149 = por %p147, %p148
      %p150 = scmp.ne.s32.totalorder %s142, %s144
      %p151 = scmp.eq.s32.totalorder %s40, 1
      %p152 = por %p150, %p151
      %p153 = scmp.ne.s32.totalorder %s144, %s145
      %p154 = scmp.eq.s32.totalorder %s40, 0
      %p155 = por %p153, %p154
      %p156 = scmp.ne.s32.totalorder %s144, %s145
      %p157 = scmp.eq.s32.totalorder %s41, 1
      %p158 = por %p156, %p157
      %p160 = scmp.ne.s32.totalorder %s145, %s159
      %p161 = scmp.eq.s32.totalorder %s41, 0
      %p162 = por %p160, %p161
      %s164 = sadd.s32 %s163, 1
      %p167 = scmp.eq.s32.totalorder %s35, 1
      %p168 = scmp.ne.s32.totalorder %s163, %s165
      %p169 = scmp.eq.s32.totalorder %s35, 0
      %p170 = por %p168, %p169
      %p171 = scmp.ne.s32.totalorder %s163, %s165
      %p172 = scmp.eq.s32.totalorder %s40, 1
      %p173 = por %p171, %p172
      %p174 = scmp.ne.s32.totalorder %s165, %s166
      %p175 = scmp.eq.s32.totalorder %s40, 0
      %p176 = por %p174, %p175
      %p177 = scmp.ne.s32.totalorder %s165, %s166
      %p178 = scmp.eq.s32.totalorder %s41, 1
      %p179 = por %p177, %p178
      %p181 = scmp.ne.s32.totalorder %s166, %s180
      %p182 = scmp.eq.s32.totalorder %s41, 0
      %p183 = por %p181, %p182
      %s185 = sadd.s32 %s184, 1
      %p188 = scmp.eq.s32.totalorder %s35, 1
      %p189 = scmp.ne.s32.totalorder %s184, %s186
      %p190 = scmp.eq.s32.totalorder %s35, 0
      %p191 = por %p189, %p190
      %p192 = scmp.ne.s32.totalorder %s184, %s186
      %p193 = scmp.eq.s32.totalorder %s40, 1
      %p194 = por %p192, %p193
      %p195 = scmp.ne.s32.totalorder %s186, %s187
      %p196 = scmp.eq.s32.totalorder %s40, 0
      %p197 = por %p195, %p196
      %p198 = scmp.ne.s32.totalorder %s186, %s187
      %p199 = scmp.eq.s32.totalorder %s41, 1
      %p200 = por %p198, %p199
      %p202 = scmp.ne.s32.totalorder %s187, %s201
      %p203 = scmp.eq.s32.totalorder %s41, 0
      %p204 = por %p202, %p203
      %s206 = sadd.s32 %s205, 1
      %p209 = scmp.eq.s32.totalorder %s35, 1
      %p210 = scmp.ne.s32.totalorder %s205, %s207
      %p211 = scmp.eq.s32.totalorder %s35, 0
      %p212 = por %p210, %p211
      %p213 = scmp.ne.s32.totalorder %s205, %s207
      %p214 = scmp.eq.s32.totalorder %s40, 1
      %p215 = por %p213, %p214
      %p216 = scmp.ne.s32.totalorder %s207, %s208
      %p217 = scmp.eq.s32.totalorder %s40, 0
      %p218 = por %p216, %p217
      %p219 = scmp.ne.s32.totalorder %s207, %s208
      %p220 = scmp.eq.s32.totalorder %s41, 1
      %p221 = por %p219, %p220
      %p223 = scmp.ne.s32.totalorder %s208, %s222
      %p224 = scmp.eq.s32.totalorder %s41, 0
      %p225 = por %p223, %p224
      %s227 = sadd.s32 %s226, 1
      %p230 = scmp.eq.s32.totalorder %s35, 1
      %p231 = scmp.ne.s32.totalorder %s226, %s228
      %p232 = scmp.eq.s32.totalorder %s35, 0
      %p233 = por %p231, %p232
      %p234 = scmp.ne.s32.totalorder %s226, %s228
      %p235 = scmp.eq.s32.totalorder %s40, 1
      %p236 = por %p234, %p235
      %p237 = scmp.ne.s32.totalorder %s228, %s229
      %p238 = scmp.eq.s32.totalorder %s40, 0
      %p239 = por %p237, %p238
      %p240 = scmp.ne.s32.totalorder %s228, %s229
      %p241 = scmp.eq.s32.totalorder %s41, 1
      %p242 = por %p240, %p241
      %p244 = scmp.ne.s32.totalorder %s229, %s243
      %p245 = scmp.eq.s32.totalorder %s41, 0
      %p246 = por %p244, %p245
      %s248 = sadd.s32 %s247, 1
      %p251 = scmp.eq.s32.totalorder %s35, 1
      %p252 = scmp.ne.s32.totalorder %s247, %s249
      %p253 = scmp.eq.s32.totalorder %s35, 0
      %p254 = por %p252, %p253
      %p255 = scmp.ne.s32.totalorder %s247, %s249
      %p256 = scmp.eq.s32.totalorder %s40, 1
      %p257 = por %p255, %p256
      %p258 = scmp.ne.s32.totalorder %s249, %s250
      %p259 = scmp.eq.s32.totalorder %s40, 0
      %p260 = por %p258, %p259
      %p261 = scmp.ne.s32.totalorder %s249, %s250
      %p262 = scmp.eq.s32.totalorder %s41, 1
      %p263 = por %p261, %p262
      %p265 = scmp.ne.s32.totalorder %s250, %s264
      %p266 = scmp.eq.s32.totalorder %s41, 0
      %p267 = por %p265, %p266
      %s269 = sadd.s32 %s268, 1
      %p272 = scmp.eq.s32.totalorder %s35, 1
      %p273 = scmp.ne.s32.totalorder %s268, %s270
      %p274 = scmp.eq.s32.totalorder %s35, 0
      %p275 = por %p273, %p274
      %p276 = scmp.ne.s32.totalorder %s268, %s270
      %p277 = scmp.eq.s32.totalorder %s40, 1
      %p278 = por %p276, %p277
      %p279 = scmp.ne.s32.totalorder %s270, %s271
      %p280 = scmp.eq.s32.totalorder %s40, 0
      %p281 = por %p279, %p280
      %p282 = scmp.ne.s32.totalorder %s270, %s271
      %p283 = scmp.eq.s32.totalorder %s41, 1
      %p284 = por %p282, %p283
      %p286 = scmp.ne.s32.totalorder %s271, %s285
      %p287 = scmp.eq.s32.totalorder %s41, 0
      %p288 = por %p286, %p287
      %s290 = sadd.s32 %s289, 1
      %p293 = scmp.eq.s32.totalorder %s35, 1
      %p294 = scmp.ne.s32.totalorder %s289, %s291
      %p295 = scmp.eq.s32.totalorder %s35, 0
      %p296 = por %p294, %p295
      %p297 = scmp.ne.s32.totalorder %s289, %s291
      %p298 = scmp.eq.s32.totalorder %s40, 1
      %p299 = por %p297, %p298
      %p300 = scmp.ne.s32.totalorder %s291, %s292
      %p301 = scmp.eq.s32.totalorder %s40, 0
      %p302 = por %p300, %p301
      %p303 = scmp.ne.s32.totalorder %s291, %s292
      %p304 = scmp.eq.s32.totalorder %s41, 1
      %p305 = por %p303, %p304
      %p307 = scmp.ne.s32.totalorder %s292, %s306
      %p308 = scmp.eq.s32.totalorder %s41, 0
      %p309 = por %p307, %p308
      %s311 = sadd.s32 %s310, 1
      %p314 = scmp.eq.s32.totalorder %s35, 1
      %p315 = scmp.ne.s32.totalorder %s310, %s312
      %p316 = scmp.eq.s32.totalorder %s35, 0
      %p317 = por %p315, %p316
      %p318 = scmp.ne.s32.totalorder %s310, %s312
      %p319 = scmp.eq.s32.totalorder %s40, 1
      %p320 = por %p318, %p319
      %p321 = scmp.ne.s32.totalorder %s312, %s313
      %p322 = scmp.eq.s32.totalorder %s40, 0
      %p323 = por %p321, %p322
      %p324 = scmp.ne.s32.totalorder %s312, %s313
      %p325 = scmp.eq.s32.totalorder %s41, 1
      %p326 = por %p324, %p325
      %p328 = scmp.ne.s32.totalorder %s313, %s327
      %p329 = scmp.eq.s32.totalorder %s41, 0
      %p330 = por %p328, %p329
      %s331 = ssub.s32 %s35, %s42
      %p332 = scmp.eq.s32.totalorder %s331, 0
      %s334 = sadd.s32 %s333, 1
      %s335 = scalar_select %p332, %s333, %s334
      %p338 = pneg %p332
      %p339 = scmp.eq.s32.totalorder %s35, 1
      %p340 = por %p338, %p339
      %p341 = scmp.ne.s32.totalorder %s333, %s336
      %p342 = scmp.eq.s32.totalorder %s35, 0
      %p343 = por %p341, %p342
      %p344 = scmp.ne.s32.totalorder %s333, %s336
      %p345 = scmp.eq.s32.totalorder %s40, 1
      %p346 = por %p344, %p345
      %p347 = scmp.ne.s32.totalorder %s336, %s337
      %p348 = scmp.eq.s32.totalorder %s40, 0
      %p349 = por %p347, %p348
      %p350 = scmp.ne.s32.totalorder %s336, %s337
      %p351 = scmp.eq.s32.totalorder %s41, 1
      %p352 = por %p350, %p351
      %p354 = scmp.ne.s32.totalorder %s337, %s353
      %p355 = scmp.eq.s32.totalorder %s41, 0
      %p356 = por %p354, %p355
      %s357 = ssub.s32 %s35, %s42
      %p358 = scmp.eq.s32.totalorder %s357, 0
      %s360 = sadd.s32 %s359, 1
      %s361 = scalar_select %p358, %s359, %s360
      %p364 = pneg %p358
      %p365 = scmp.eq.s32.totalorder %s35, 1
      %p366 = por %p364, %p365
      %p367 = scmp.ne.s32.totalorder %s359, %s362
      %p368 = scmp.eq.s32.totalorder %s35, 0
      %p369 = por %p367, %p368
      %p370 = scmp.ne.s32.totalorder %s359, %s362
      %p371 = scmp.eq.s32.totalorder %s40, 1
      %p372 = por %p370, %p371
      %p373 = scmp.ne.s32.totalorder %s362, %s363
      %p374 = scmp.eq.s32.totalorder %s40, 0
      %p375 = por %p373, %p374
      %p376 = scmp.ne.s32.totalorder %s362, %s363
      %p377 = scmp.eq.s32.totalorder %s41, 1
      %p378 = por %p376, %p377
      %p380 = scmp.ne.s32.totalorder %s363, %s379
      %p381 = scmp.eq.s32.totalorder %s41, 0
      %p382 = por %p380, %p381
      %p383 = scmp.le.s32.totalorder 1, %s35
      %p384 = scmp.lt.s32.totalorder %s35, 3
      %p385 = pnand %p383, %p384
      %p386 = pneg %p385
      // Predicated region
      $region9: #{tpu_custom_call.1} parent=5 // pred_check
        _
      $region10: #{tpu_custom_call.1} parent=5 // pred_check_branch
        %388 = sbr.rel (%p385) target = $region12
      $region11: #{tpu_custom_call.1} parent=5 // pred_region
        %s389 = ssub.s32 %s35, 1
        // Predicated region
        $region13: #{tpu_custom_call.1} parent=11 // pred_check
          %p390 = pneg %p134
        $region14: #{tpu_custom_call.1} parent=11 // pred_check_branch
          %392 = sbr.rel (%p390) target = $region16
        $region15: #{tpu_custom_call.1} parent=11 // pred_region
          _
        $region16: #{tpu_custom_call.1} parent=11 // pred_fallthru
          _
        // Predicated region
        $region17: #{tpu_custom_call.1} parent=11 // pred_check
          %p393 = pneg %p155
        $region18: #{tpu_custom_call.1} parent=11 // pred_check_branch
          %395 = sbr.rel (%p393) target = $region20
        $region19: #{tpu_custom_call.1} parent=11 // pred_region
          _
        $region20: #{tpu_custom_call.1} parent=11 // pred_fallthru
          _
        // Predicated region
        $region21: #{tpu_custom_call.1} parent=11 // pred_check
          %p396 = pneg %p176
        $region22: #{tpu_custom_call.1} parent=11 // pred_check_branch
          %398 = sbr.rel (%p396) target = $region24
        $region23: #{tpu_custom_call.1} parent=11 // pred_region
          %400 = vsyncadd [#allocation9], 0
          %s401 = sshll.u32 %s5, 4
          %s402 = int_to_ptr.hbm [resolvable:$true] %s401
          %s403 = sshll.u32 [#allocation8], 4
          %s404 = int_to_ptr.vmem [resolvable:$true] %s403
          %409 = dma.hbm_to_vmem [thread:$0]  %s402, 512, %s404, [#allocation9], 128, 128, 8
        $region24: #{tpu_custom_call.1} parent=11 // pred_fallthru
          _
        // Predicated region
        $region25: #{tpu_custom_call.1} parent=11 // pred_check
          %p410 = pneg %p197
        $region26: #{tpu_custom_call.1} parent=11 // pred_check_branch
          %412 = sbr.rel (%p410) target = $region28
        $region27: #{tpu_custom_call.1} parent=11 // pred_region
          _
        $region28: #{tpu_custom_call.1} parent=11 // pred_fallthru
          _
        // Predicated region
        $region29: #{tpu_custom_call.1} parent=11 // pred_check
          %p413 = pneg %p218
        $region30: #{tpu_custom_call.1} parent=11 // pred_check_branch
          %415 = sbr.rel (%p413) target = $region32
        $region31: #{tpu_custom_call.1} parent=11 // pred_region
          %417 = vsyncadd [#allocation9], 0
          %s418 = sshll.u32 %s7, 4
          %s419 = int_to_ptr.hbm [resolvable:$true] %s418
          %s420 = sshll.u32 [#allocation10], 4
          %s421 = int_to_ptr.vmem [resolvable:$true] %s420
          %426 = dma.hbm_to_vmem [thread:$0]  %s419, 512, %s421, [#allocation9], 128, 128, 8
        $region32: #{tpu_custom_call.1} parent=11 // pred_fallthru
          _
        // Predicated region
        $region33: #{tpu_custom_call.1} parent=11 // pred_check
          %p427 = pneg %p239
        $region34: #{tpu_custom_call.1} parent=11 // pred_check_branch
          %429 = sbr.rel (%p427) target = $region36
        $region35: #{tpu_custom_call.1} parent=11 // pred_region
          _
        $region36: #{tpu_custom_call.1} parent=11 // pred_fallthru
          _
        // Predicated region
        $region37: #{tpu_custom_call.1} parent=11 // pred_check
          %p430 = pneg %p260
        $region38: #{tpu_custom_call.1} parent=11 // pred_check_branch
          %432 = sbr.rel (%p430) target = $region40
        $region39: #{tpu_custom_call.1} parent=11 // pred_region
          %434 = vsyncadd [#allocation12], 0
          %s435 = sshll.u32 %s9, 4
          %s436 = int_to_ptr.hbm [resolvable:$true] %s435
          %s437 = sshll.u32 [#allocation11], 4
          %s438 = int_to_ptr.vmem [resolvable:$true] %s437
          %443 = dma.hbm_to_vmem [thread:$0]  %s436, 512, %s438, [#allocation12], 128, 128, 8
        $region40: #{tpu_custom_call.1} parent=11 // pred_fallthru
          _
        // Predicated region
        $region41: #{tpu_custom_call.1} parent=11 // pred_check
          %p444 = pneg %p281
        $region42: #{tpu_custom_call.1} parent=11 // pred_check_branch
          %446 = sbr.rel (%p444) target = $region44
        $region43: #{tpu_custom_call.1} parent=11 // pred_region
          _
        $region44: #{tpu_custom_call.1} parent=11 // pred_fallthru
          _
        // Predicated region
        $region45: #{tpu_custom_call.1} parent=11 // pred_check
          %p447 = pneg %p302
        $region46: #{tpu_custom_call.1} parent=11 // pred_check_branch
          %449 = sbr.rel (%p447) target = $region48
        $region47: #{tpu_custom_call.1} parent=11 // pred_region
          %451 = vsyncadd [#allocation12], 0
          %s452 = sshll.u32 %s11, 4
          %s453 = int_to_ptr.hbm [resolvable:$true] %s452
          %s454 = sshll.u32 [#allocation13], 4
          %s455 = int_to_ptr.vmem [resolvable:$true] %s454
          %460 = dma.hbm_to_vmem [thread:$0]  %s453, 512, %s455, [#allocation12], 128, 128, 8
        $region48: #{tpu_custom_call.1} parent=11 // pred_fallthru
          _
        // Predicated region
        $region49: #{tpu_custom_call.1} parent=11 // pred_check
          %p461 = pneg %p323
        $region50: #{tpu_custom_call.1} parent=11 // pred_check_branch
          %463 = sbr.rel (%p461) target = $region52
        $region51: #{tpu_custom_call.1} parent=11 // pred_region
          _
        $region52: #{tpu_custom_call.1} parent=11 // pred_fallthru
          _
      $region12: #{tpu_custom_call.1} parent=5 // pred_fallthru
        _
      %p464 = scmp.lt.s32.totalorder %s35, 2
      // Predicated region
      $region53: #{tpu_custom_call.1} parent=5 // pred_check
        %p465 = pneg %p464
      $region54: #{tpu_custom_call.1} parent=5 // pred_check_branch
        %467 = sbr.rel (%p465) target = $region56
      $region55: #{tpu_custom_call.1} parent=5 // pred_region
        // Predicated region
        $region57: #{tpu_custom_call.1} parent=55 // pred_check
          %p468 = pneg %p55
        $region58: #{tpu_custom_call.1} parent=55 // pred_check_branch
          %470 = sbr.rel (%p468) target = $region60
        $region59: #{tpu_custom_call.1} parent=55 // pred_region
          %s471 = sand.u32 %s45, 1
          %s472 = scalar_lea.sflag [#allocation3], %s471
          %s473 = sand.u32 %s45, 1
          %s474 = smul.addr %s473, 8
          %s475 = scalar_lea.vmem [#allocation2], %s474
          %477 = vsyncadd %s472, 0
          %s478 = smul.addr %s35, 8
          %s479 = scalar_lea.hbm %s0, %s478
          %s481 = sshll.u32 %s479, 4
          %s482 = int_to_ptr.hbm [resolvable:$true] %s481
          %s483 = sshll.u32 %s475, 4
          %s484 = int_to_ptr.vmem [resolvable:$true] %s483
          %486 = dma.hbm_to_vmem [thread:$0]  %s482, 128, %s484, %s472
        $region60: #{tpu_custom_call.1} parent=55 // pred_fallthru
          _
        // Predicated region
        $region61: #{tpu_custom_call.1} parent=55 // pred_check
          %p487 = pneg %p81
        $region62: #{tpu_custom_call.1} parent=55 // pred_check_branch
          %489 = sbr.rel (%p487) target = $region64
        $region63: #{tpu_custom_call.1} parent=55 // pred_region
          %s490 = sand.u32 %s35, 1
          %s491 = scalar_lea.sflag [#allocation6], %s490
          %s492 = sand.u32 %s71, 1
          %s493 = smul.addr %s492, 8
          %s494 = scalar_lea.vmem [#allocation5], %s493
          %496 = vsyncadd %s491, 0
          %s497 = smul.addr %s35, 8
          %s498 = scalar_lea.hbm %s1, %s497
          %s500 = sshll.u32 %s498, 4
          %s501 = int_to_ptr.hbm [resolvable:$true] %s500
          %s502 = sshll.u32 %s494, 4
          %s503 = int_to_ptr.vmem [resolvable:$true] %s502
          %505 = dma.hbm_to_vmem [thread:$0]  %s501, 128, %s503, %s491
        $region64: #{tpu_custom_call.1} parent=55 // pred_fallthru
          _
        // Predicated region
        $region65: #{tpu_custom_call.1} parent=55 // pred_check
          %p506 = pneg %p107
        $region66: #{tpu_custom_call.1} parent=55 // pred_check_branch
          %508 = sbr.rel (%p506) target = $region68
        $region67: #{tpu_custom_call.1} parent=55 // pred_region
          %s509 = sand.u32 %s35, 1
          %s510 = scalar_lea.sflag [#allocation6], %s509
          %s511 = sand.u32 %s97, 1
          %s512 = smul.addr %s511, 8
          %s513 = scalar_lea.vmem [#allocation7], %s512
          %515 = vsyncadd %s510, 0
          %s516 = smul.addr %s35, 8
          %s517 = scalar_lea.hbm %s2, %s516
          %s519 = sshll.u32 %s517, 4
          %s520 = int_to_ptr.hbm [resolvable:$true] %s519
          %s521 = sshll.u32 %s513, 4
          %s522 = int_to_ptr.vmem [resolvable:$true] %s521
          %524 = dma.hbm_to_vmem [thread:$0]  %s520, 128, %s522, %s510
        $region68: #{tpu_custom_call.1} parent=55 // pred_fallthru
          _
      $region56: #{tpu_custom_call.1} parent=5 // pred_fallthru
        _
      %p525 = scmp.le.s32.totalorder 1, %s35
      %p526 = scmp.lt.s32.totalorder %s35, 3
      %p527 = pnand %p525, %p526
      %p528 = pneg %p527
      // Predicated region
      $region69: #{tpu_custom_call.1} parent=5 // pred_check
        _
      $region70: #{tpu_custom_call.1} parent=5 // pred_check_branch
        %530 = sbr.rel (%p527) target = $region72
      $region71: #{tpu_custom_call.1} parent=5 // pred_region
        %s531 = ssub.s32 %s35, 1
        %s532 = sand.u32 %s48, 1
        %s533 = scalar_lea.sflag [#allocation3], %s532
        %s534 = sand.u32 %s48, 1
        %s535 = smul.addr %s534, 8
        %s536 = scalar_lea.vmem [#allocation2], %s535
        // Predicated region
        $region73: #{tpu_custom_call.1} parent=71 // pred_check
          %p537 = pneg %p61
        $region74: #{tpu_custom_call.1} parent=71 // pred_check_branch
          %539 = sbr.rel (%p537) target = $region76
        $region75: #{tpu_custom_call.1} parent=71 // pred_region
          %541 = dma.done %s533, 128
        $region76: #{tpu_custom_call.1} parent=71 // pred_fallthru
          _
        %s542 = sand.u32 %s40, 1
        %s543 = scalar_lea.sflag [#allocation6], %s542
        %s544 = sand.u32 %s74, 1
        %s545 = smul.addr %s544, 8
        %s546 = scalar_lea.vmem [#allocation5], %s545
        // Predicated region
        $region77: #{tpu_custom_call.1} parent=71 // pred_check
          %p547 = pneg %p87
        $region78: #{tpu_custom_call.1} parent=71 // pred_check_branch
          %549 = sbr.rel (%p547) target = $region80
        $region79: #{tpu_custom_call.1} parent=71 // pred_region
          %551 = dma.done %s543, 128
        $region80: #{tpu_custom_call.1} parent=71 // pred_fallthru
          _
        %s552 = sand.u32 %s40, 1
        %s553 = scalar_lea.sflag [#allocation6], %s552
        %s554 = sand.u32 %s100, 1
        %s555 = smul.addr %s554, 8
        %s556 = scalar_lea.vmem [#allocation7], %s555
        // Predicated region
        $region81: #{tpu_custom_call.1} parent=71 // pred_check
          %p557 = pneg %p113
        $region82: #{tpu_custom_call.1} parent=71 // pred_check_branch
          %559 = sbr.rel (%p557) target = $region84
        $region83: #{tpu_custom_call.1} parent=71 // pred_region
          %561 = dma.done %s553, 128
        $region84: #{tpu_custom_call.1} parent=71 // pred_fallthru
          _
        // Predicated region
        $region85: #{tpu_custom_call.1} parent=71 // pred_check
          %p562 = pneg %p176
        $region86: #{tpu_custom_call.1} parent=71 // pred_check_branch
          %564 = sbr.rel (%p562) target = $region88
        $region87: #{tpu_custom_call.1} parent=71 // pred_region
          %566 = dma.done [#allocation9], 512
        $region88: #{tpu_custom_call.1} parent=71 // pred_fallthru
          _
        // Predicated region
        $region89: #{tpu_custom_call.1} parent=71 // pred_check
          %p567 = pneg %p218
        $region90: #{tpu_custom_call.1} parent=71 // pred_check_branch
          %569 = sbr.rel (%p567) target = $region92
        $region91: #{tpu_custom_call.1} parent=71 // pred_region
          %571 = dma.done [#allocation9], 512
        $region92: #{tpu_custom_call.1} parent=71 // pred_fallthru
          _
        // Predicated region
        $region93: #{tpu_custom_call.1} parent=71 // pred_check
          %p572 = pneg %p260
        $region94: #{tpu_custom_call.1} parent=71 // pred_check_branch
          %574 = sbr.rel (%p572) target = $region96
        $region95: #{tpu_custom_call.1} parent=71 // pred_region
          %576 = dma.done [#allocation12], 512
        $region96: #{tpu_custom_call.1} parent=71 // pred_fallthru
          _
        // Predicated region
        $region97: #{tpu_custom_call.1} parent=71 // pred_check
          %p577 = pneg %p302
        $region98: #{tpu_custom_call.1} parent=71 // pred_check_branch
          %579 = sbr.rel (%p577) target = $region100
        $region99: #{tpu_custom_call.1} parent=71 // pred_region
          %581 = dma.done [#allocation12], 512
        $region100: #{tpu_custom_call.1} parent=71 // pred_fallthru
          _
        %s582 = sand.u32 %s48, 1
        %s583 = scalar_lea.sflag [#allocation3], %s582
        %s584 = sand.u32 %s48, 1
        %s585 = smul.addr %s584, 8
        %s586 = scalar_lea.vmem [#allocation2], %s585
        %p587 = pneg %p61
        %p588 = pneg %p58
        %s589 = sand.u32 %s40, 1
        %s590 = scalar_lea.sflag [#allocation6], %s589
        %s591 = sand.u32 %s74, 1
        %s592 = smul.addr %s591, 8
        %s593 = scalar_lea.vmem [#allocation5], %s592
        %p594 = pneg %p87
        %p595 = pneg %p84
        %s596 = sand.u32 %s40, 1
        %s597 = scalar_lea.sflag [#allocation6], %s596
        %s598 = sand.u32 %s100, 1
        %s599 = smul.addr %s598, 8
        %s600 = scalar_lea.vmem [#allocation7], %s599
        %p601 = pneg %p113
        %p602 = pneg %p110
        %p603 = pneg %p134
        %p604 = pneg %p131
        %p605 = pneg %p155
        %p606 = pneg %p152
        %p607 = pneg %p176
        %p608 = pneg %p173
        %p609 = pneg %p197
        %p610 = pneg %p194
        %p611 = pneg %p218
        %p612 = pneg %p215
        %p613 = pneg %p239
        %p614 = pneg %p236
        %p615 = pneg %p260
        %p616 = pneg %p257
        %p617 = pneg %p281
        %p618 = pneg %p278
        %p619 = pneg %p302
        %p620 = pneg %p299
        %p621 = pneg %p323
        %p622 = pneg %p320
        %p623 = pneg %p349
        %p624 = pneg %p346
        %s625 = sand.u32 %s336, 1
        %s626 = scalar_lea.sflag [#allocation4], %s625
        %s627 = sand.u32 %s336, 1
        %s628 = smul.addr %s627, 8
        %s629 = scalar_lea.vmem [#allocation14], %s628
        %p630 = pneg %p375
        %p631 = pneg %p372
        %s632 = sand.u32 %s362, 1
        %s633 = scalar_lea.sflag [#allocation16], %s632
        %s634 = sand.u32 %s362, 1
        %s635 = smul.addr %s634, 8
        %s636 = scalar_lea.vmem [#allocation15], %s635
        %v637 = vld [vmem:[%s536] sm:$0xff]
        %v638 = vld [vmem:[%s546] sm:$0xff]
        %v639 = vld [vmem:[%s556] sm:$0xff]
        %v640 = vld [vmem:[%s3] sm:$0x1]
        %v641 = vld [vmem:[%s4] sm:$0x1]
        %vm642 = vcmask 261120
        %v643 = vsel %vm642, %v637, 0.0
        %644 = vadd.xlane.f32.xlu0 %v643
        %v645 = vpop.xlane.xlu0 %644
        %v646 = vrcp.pop 32.0
        %v647 = vmul.f32 32.0, %v646
        %v648 = vsub.f32 1.0, %v647
        %v649 = vmul.f32 %v646, %v648
        %v650 = vadd.f32 %v646, %v649
        %vm651 = vweird.f32 %v646
        %v652 = vsel %vm651, %v646, %v650
        %v653 = vmul.f32 %v645, %v652
        %v654 = vsub.f32 %v637, %v653
        %v655 = vmul.f32 %v654, %v654
        %v656 = vsel %vm642, %v655, 0.0
        %657 = vadd.xlane.f32.xlu0 %v656
        %v658 = vpop.xlane.xlu0 %657
        %v659 = vmul.f32 %v658, %v652
        %v660 = vadd.f32 %v659, 1e-05
        %v661 = vrsqrt.pop %v660
        %v662 = vmul.f32 %v661, %v660
        %v663 = vmul.f32 %v662, %v661
        %v664 = vmul.f32 0.5, %v663
        %v665 = vsub.f32 1.5, %v664
        %v666 = vmul.f32 %v661, %v665
        %vm667 = vweird.f32 %v660
        %vm668 = vweird.f32 %v661
        %vm669 = vmor %vm667, %vm668
        %v670 = vsel %vm669, %v661, %v666
        %v671 = vmul.f32 %v654, %v670
        %v673 = vperm.slane %v640, 0
        %v675 = vmul.f32 %v671, %v673
        %v677 = vperm.slane %v641, 0
        %v679 = vadd.f32 %v675, %v677
        %v680 = vsel %vm642, %v638, 0.0
        %681 = vadd.xlane.f32.xlu0 %v680
        %v682 = vpop.xlane.xlu0 %681
        %v683 = vmul.f32 %v682, %v652
        %v684 = vsub.f32 %v638, %v683
        %v685 = vmul.f32 %v684, %v684
        %v686 = vsel %vm642, %v685, 0.0
        %687 = vadd.xlane.f32.xlu0 %v686
        %v688 = vpop.xlane.xlu0 %687
        %v689 = vmul.f32 %v688, %v652
        %v690 = vadd.f32 %v689, 1e-05
        %v691 = vrsqrt.pop %v690
        %v692 = vmul.f32 %v691, %v690
        %v693 = vmul.f32 %v692, %v691
        %v694 = vmul.f32 0.5, %v693
        %v695 = vsub.f32 1.5, %v694
        %v696 = vmul.f32 %v691, %v695
        %vm697 = vweird.f32 %v690
        %vm698 = vweird.f32 %v691
        %vm699 = vmor %vm697, %vm698
        %v700 = vsel %vm699, %v691, %v696
        %v701 = vmul.f32 %v684, %v700
        %v702 = vmul.f32 %v701, %v673
        %v703 = vadd.f32 %v702, %v677
        %v704 = vsel %vm642, %v639, 0.0
        %705 = vadd.xlane.f32.xlu0 %v704
        %v706 = vpop.xlane.xlu0 %705
        %v707 = vmul.f32 %v706, %v652
        %v708 = vsub.f32 %v639, %v707
        %v709 = vmul.f32 %v708, %v708
        %v710 = vsel %vm642, %v709, 0.0
        %711 = vadd.xlane.f32.xlu0 %v710
        %v712 = vpop.xlane.xlu0 %711
        %v713 = vmul.f32 %v712, %v652
        %v714 = vadd.f32 %v713, 1e-05
        %v715 = vrsqrt.pop %v714
        %v716 = vmul.f32 %v715, %v714
        %v717 = vmul.f32 %v716, %v715
        %v718 = vmul.f32 0.5, %v717
        %v719 = vsub.f32 1.5, %v718
        %v720 = vmul.f32 %v715, %v719
        %vm721 = vweird.f32 %v714
        %vm722 = vweird.f32 %v715
        %vm723 = vmor %vm721, %vm722
        %v724 = vsel %vm723, %v715, %v720
        %v725 = vmul.f32 %v708, %v724
        %v726 = vmul.f32 %v725, %v673
        %v727 = vadd.f32 %v726, %v677
        %v728 = vld [vmem:[#allocation8] sm:$0xff]
        %v729 = vld [vmem:[#allocation8 + $0x8] sm:$0xff]
        %v730 = vld [vmem:[#allocation8 + $0x10] sm:$0xff]
        %v731 = vld [vmem:[#allocation8 + $0x18] sm:$0xff]
        %v732 = vld [vmem:[%s6] sm:$0x1]
        %v734 = vperm.slane %v732, 0
        %v737 = vsel %vm642, %v679, 0
        %739 = vmatpush.msra.mxu0 0.0
        %740 = vmatpush.msra.mxu0 0.0
        %741 = vmatpush.msra.mxu0 0.0
        %742 = vmatpush.msra.mxu0 0.0
        %743 = vmatpush.msra.mxu0 0.0
        %744 = vmatpush.msra.mxu0 0.0
        %745 = vmatpush.msra.mxu0 0.0
        %746 = vmatpush.msra.mxu0 0.0
        %747 = vmatpush.msra.mxu0 0.0
        %748 = vmatpush.msra.mxu0 0.0
        %749 = vmatpush.msra.mxu0 0.0
        %750 = vmatpush.msra.mxu0 0.0
        %751 = vmatpush.msra.mxu0 %v731
        %752 = vmatpush.msra.mxu0 %v730
        %753 = vmatpush.msra.mxu0 %v729
        %754 = vmatpush.msra.mxu0 %v728
        %755 = vmatmul.f32.gmra.mxu0 %v737
        %v756 = vpop.f32.mrf.mxu0
        %v757 = vadd.f32 %v734, %v756
        %758 = vdwg.mxu0
        %v759 = vmul.f32 %v757, 0.35355338
        %v760 = vld [vmem:[#allocation10] sm:$0xff]
        %v761 = vld [vmem:[#allocation10 + $0x8] sm:$0xff]
        %v762 = vld [vmem:[#allocation10 + $0x10] sm:$0xff]
        %v763 = vld [vmem:[#allocation10 + $0x18] sm:$0xff]
        %v764 = vld [vmem:[%s8] sm:$0x1]
        %v766 = vperm.slane %v764, 0
        %v769 = vsel %vm642, %v703, 0
        %771 = vmatpush.msra.mxu0 0.0
        %772 = vmatpush.msra.mxu0 0.0
        %773 = vmatpush.msra.mxu0 0.0
        %774 = vmatpush.msra.mxu0 0.0
        %775 = vmatpush.msra.mxu0 0.0
        %776 = vmatpush.msra.mxu0 0.0
        %777 = vmatpush.msra.mxu0 0.0
        %778 = vmatpush.msra.mxu0 0.0
        %779 = vmatpush.msra.mxu0 0.0
        %780 = vmatpush.msra.mxu0 0.0
        %781 = vmatpush.msra.mxu0 0.0
        %782 = vmatpush.msra.mxu0 0.0
        %783 = vmatpush.msra.mxu0 %v763
        %784 = vmatpush.msra.mxu0 %v762
        %785 = vmatpush.msra.mxu0 %v761
        %786 = vmatpush.msra.mxu0 %v760
        %787 = vmatmul.f32.gmra.mxu0 %v769
        %v788 = vpop.f32.mrf.mxu0
        %v789 = vadd.f32 %v766, %v788
        %790 = vdwg.mxu0
        %v791 = vld [vmem:[#allocation11] sm:$0xff]
        %v792 = vld [vmem:[#allocation11 + $0x8] sm:$0xff]
        %v793 = vld [vmem:[#allocation11 + $0x10] sm:$0xff]
        %v794 = vld [vmem:[#allocation11 + $0x18] sm:$0xff]
        %v795 = vld [vmem:[%s10] sm:$0x1]
        %v797 = vperm.slane %v795, 0
        %v800 = vsel %vm642, %v727, 0
        %802 = vmatpush.msra.mxu0 0.0
        %803 = vmatpush.msra.mxu0 0.0
        %804 = vmatpush.msra.mxu0 0.0
        %805 = vmatpush.msra.mxu0 0.0
        %806 = vmatpush.msra.mxu0 0.0
        %807 = vmatpush.msra.mxu0 0.0
        %808 = vmatpush.msra.mxu0 0.0
        %809 = vmatpush.msra.mxu0 0.0
        %810 = vmatpush.msra.mxu0 0.0
        %811 = vmatpush.msra.mxu0 0.0
        %812 = vmatpush.msra.mxu0 0.0
        %813 = vmatpush.msra.mxu0 0.0
        %814 = vmatpush.msra.mxu0 %v794
        %815 = vmatpush.msra.mxu0 %v793
        %816 = vmatpush.msra.mxu0 %v792
        %817 = vmatpush.msra.mxu0 %v791
        %818 = vmatmul.f32.gmra.mxu0 %v800
        %v819 = vpop.f32.mrf.mxu0
        %v820 = vadd.f32 %v797, %v819
        %821 = vdwg.mxu0
        %vm822 = vcmask 64512
        %v824 = vsel %vm822, %v759, 0
        %v827 = vsel %vm822, %v789, 0
        %829 = vmatpush.xpose.msra.mxu0 0.0
        %830 = vmatpush.xpose.msra.mxu0 0.0
        %831 = vmatpush.xpose.msra.mxu0 0.0
        %832 = vmatpush.xpose.msra.mxu0 0.0
        %833 = vmatpush.xpose.msra.mxu0 0.0
        %834 = vmatpush.xpose.msra.mxu0 0.0
        %835 = vmatpush.xpose.msra.mxu0 0.0
        %836 = vmatpush.xpose.msra.mxu0 0.0
        %837 = vmatpush.xpose.msra.mxu0 0.0
        %838 = vmatpush.xpose.msra.mxu0 0.0
        %839 = vmatpush.xpose.msra.mxu0 0.0
        %840 = vmatpush.xpose.msra.mxu0 0.0
        %841 = vmatpush.xpose.msra.mxu0 0.0
        %842 = vmatpush.xpose.msra.mxu0 0.0
        %843 = vmatpush.xpose.msra.mxu0 0.0
        %844 = vmatpush.xpose.msra.mxu0 %v827
        %845 = vmatmul.f32.gmra.mxu0 %v824
        %v846 = vpop.f32.mrf.mxu0
        %v847 = vadd.f32 0.0, %v846
        %848 = vdwg.mxu0
        %v849 = vsel %vm822, %v847, -inf
        %850 = vmax.xlane.f32.xlu0 %v849
        %v851 = vpop.xlane.xlu0 %850
        %v852 = vsub.f32 %v847, %v851
        %v853 = vmul.f32 %v852, 1.442695
        %v854 = vpow.pop %v853
        %v855 = vsel %vm822, %v854, 0.0
        %856 = vadd.xlane.f32.xlu0 %v855
        %v857 = vpop.xlane.xlu0 %856
        %v858 = vrcp.pop %v857
        %v859 = vmul.f32 %v854, %v858
        %v861 = vsel %vm822, %v859, 0
        %863 = vmatpush.msra.mxu0 0.0
        %864 = vmatpush.msra.mxu0 0.0
        %865 = vmatpush.msra.mxu0 0.0
        %866 = vmatpush.msra.mxu0 0.0
        %867 = vmatpush.msra.mxu0 0.0
        %868 = vmatpush.msra.mxu0 0.0
        %869 = vmatpush.msra.mxu0 0.0
        %870 = vmatpush.msra.mxu0 0.0
        %871 = vmatpush.msra.mxu0 0.0
        %872 = vmatpush.msra.mxu0 0.0
        %873 = vmatpush.msra.mxu0 0.0
        %874 = vmatpush.msra.mxu0 0.0
        %875 = vmatpush.msra.mxu0 0.0
        %876 = vmatpush.msra.mxu0 0.0
        %877 = vmatpush.msra.mxu0 0.0
        %878 = vmatpush.msra.mxu0 %v820
        %879 = vmatmul.f32.gmra.mxu0 %v861
        %v880 = vpop.f32.mrf.mxu0
        %v881 = vadd.f32 0.0, %v880
        %882 = vdwg.mxu0
        %883 = vrot.lane.b32.xlu0 %v759, 120
        %v884 = vpop.permute.xlu0 %883
        %885 = vrot.lane.b32.xlu0 %v789, 120
        %v886 = vpop.permute.xlu0 %885
        %v887 = vsel %vm822, %v884, 0
        %v889 = vsel %vm822, %v886, 0
        %891 = vmatpush.xpose.msra.mxu0 0.0
        %892 = vmatpush.xpose.msra.mxu0 0.0
        %893 = vmatpush.xpose.msra.mxu0 0.0
        %894 = vmatpush.xpose.msra.mxu0 0.0
        %895 = vmatpush.xpose.msra.mxu0 0.0
        %896 = vmatpush.xpose.msra.mxu0 0.0
        %897 = vmatpush.xpose.msra.mxu0 0.0
        %898 = vmatpush.xpose.msra.mxu0 0.0
        %899 = vmatpush.xpose.msra.mxu0 0.0
        %900 = vmatpush.xpose.msra.mxu0 0.0
        %901 = vmatpush.xpose.msra.mxu0 0.0
        %902 = vmatpush.xpose.msra.mxu0 0.0
        %903 = vmatpush.xpose.msra.mxu0 0.0
        %904 = vmatpush.xpose.msra.mxu0 0.0
        %905 = vmatpush.xpose.msra.mxu0 0.0
        %906 = vmatpush.xpose.msra.mxu0 %v889
        %907 = vmatmul.f32.gmra.mxu0 %v887
        %v908 = vpop.f32.mrf.mxu0
        %v909 = vadd.f32 0.0, %v908
        %910 = vdwg.mxu0
        %v911 = vsel %vm822, %v909, -inf
        %912 = vmax.xlane.f32.xlu0 %v911
        %v913 = vpop.xlane.xlu0 %912
        %v914 = vsub.f32 %v909, %v913
        %v915 = vmul.f32 %v914, 1.442695
        %v916 = vpow.pop %v915
        %v917 = vsel %vm822, %v916, 0.0
        %918 = vadd.xlane.f32.xlu0 %v917
        %v919 = vpop.xlane.xlu0 %918
        %v920 = vrcp.pop %v919
        %v921 = vmul.f32 %v916, %v920
        %923 = vrot.lane.b32.xlu0 %v820, 120
        %v924 = vpop.permute.xlu0 %923
        %v927 = vsel %vm822, %v921, 0
        %929 = vmatpush.msra.mxu0 0.0
        %930 = vmatpush.msra.mxu0 0.0
        %931 = vmatpush.msra.mxu0 0.0
        %932 = vmatpush.msra.mxu0 0.0
        %933 = vmatpush.msra.mxu0 0.0
        %934 = vmatpush.msra.mxu0 0.0
        %935 = vmatpush.msra.mxu0 0.0
        %936 = vmatpush.msra.mxu0 0.0
        %937 = vmatpush.msra.mxu0 0.0
        %938 = vmatpush.msra.mxu0 0.0
        %939 = vmatpush.msra.mxu0 0.0
        %940 = vmatpush.msra.mxu0 0.0
        %941 = vmatpush.msra.mxu0 0.0
        %942 = vmatpush.msra.mxu0 0.0
        %943 = vmatpush.msra.mxu0 0.0
        %944 = vmatpush.msra.mxu0 %v924
        %945 = vmatmul.f32.gmra.mxu0 %v927
        %v946 = vpop.f32.mrf.mxu0
        %v947 = vadd.f32 0.0, %v946
        %948 = vdwg.mxu0
        %949 = vrot.lane.b32.xlu0 %v759, 112
        %v950 = vpop.permute.xlu0 %949
        %951 = vrot.lane.b32.xlu0 %v789, 112
        %v952 = vpop.permute.xlu0 %951
        %v953 = vsel %vm822, %v950, 0
        %v955 = vsel %vm822, %v952, 0
        %957 = vmatpush.xpose.msra.mxu0 0.0
        %958 = vmatpush.xpose.msra.mxu0 0.0
        %959 = vmatpush.xpose.msra.mxu0 0.0
        %960 = vmatpush.xpose.msra.mxu0 0.0
        %961 = vmatpush.xpose.msra.mxu0 0.0
        %962 = vmatpush.xpose.msra.mxu0 0.0
        %963 = vmatpush.xpose.msra.mxu0 0.0
        %964 = vmatpush.xpose.msra.mxu0 0.0
        %965 = vmatpush.xpose.msra.mxu0 0.0
        %966 = vmatpush.xpose.msra.mxu0 0.0
        %967 = vmatpush.xpose.msra.mxu0 0.0
        %968 = vmatpush.xpose.msra.mxu0 0.0
        %969 = vmatpush.xpose.msra.mxu0 0.0
        %970 = vmatpush.xpose.msra.mxu0 0.0
        %971 = vmatpush.xpose.msra.mxu0 0.0
        %972 = vmatpush.xpose.msra.mxu0 %v955
        %973 = vmatmul.f32.gmra.mxu0 %v953
        %v974 = vpop.f32.mrf.mxu0
        %v975 = vadd.f32 0.0, %v974
        %976 = vdwg.mxu0
        %v977 = vsel %vm822, %v975, -inf
        %978 = vmax.xlane.f32.xlu0 %v977
        %v979 = vpop.xlane.xlu0 %978
        %v980 = vsub.f32 %v975, %v979
        %v981 = vmul.f32 %v980, 1.442695
        %v982 = vpow.pop %v981
        %v983 = vsel %vm822, %v982, 0.0
        %984 = vadd.xlane.f32.xlu0 %v983
        %v985 = vpop.xlane.xlu0 %984
        %v986 = vrcp.pop %v985
        %v987 = vmul.f32 %v982, %v986
        %988 = vrot.lane.b32.xlu0 %v820, 112
        %v989 = vpop.permute.xlu0 %988
        %v992 = vsel %vm822, %v987, 0
        %994 = vmatpush.msra.mxu0 0.0
        %995 = vmatpush.msra.mxu0 0.0
        %996 = vmatpush.msra.mxu0 0.0
        %997 = vmatpush.msra.mxu0 0.0
        %998 = vmatpush.msra.mxu0 0.0
        %999 = vmatpush.msra.mxu0 0.0
        %1000 = vmatpush.msra.mxu0 0.0
        %1001 = vmatpush.msra.mxu0 0.0
        %1002 = vmatpush.msra.mxu0 0.0
        %1003 = vmatpush.msra.mxu0 0.0
        %1004 = vmatpush.msra.mxu0 0.0
        %1005 = vmatpush.msra.mxu0 0.0
        %1006 = vmatpush.msra.mxu0 0.0
        %1007 = vmatpush.msra.mxu0 0.0
        %1008 = vmatpush.msra.mxu0 0.0
        %1009 = vmatpush.msra.mxu0 %v989
        %1010 = vmatmul.f32.gmra.mxu0 %v992
        %v1011 = vpop.f32.mrf.mxu0
        %v1012 = vadd.f32 0.0, %v1011
        %1013 = vdwg.mxu0
        %1014 = vrot.lane.b32.xlu0 %v759, 104
        %v1015 = vpop.permute.xlu0 %1014
        %1016 = vrot.lane.b32.xlu0 %v789, 104
        %v1017 = vpop.permute.xlu0 %1016
        %v1018 = vsel %vm822, %v1015, 0
        %v1020 = vsel %vm822, %v1017, 0
        %1022 = vmatpush.xpose.msra.mxu0 0.0
        %1023 = vmatpush.xpose.msra.mxu0 0.0
        %1024 = vmatpush.xpose.msra.mxu0 0.0
        %1025 = vmatpush.xpose.msra.mxu0 0.0
        %1026 = vmatpush.xpose.msra.mxu0 0.0
        %1027 = vmatpush.xpose.msra.mxu0 0.0
        %1028 = vmatpush.xpose.msra.mxu0 0.0
        %1029 = vmatpush.xpose.msra.mxu0 0.0
        %1030 = vmatpush.xpose.msra.mxu0 0.0
        %1031 = vmatpush.xpose.msra.mxu0 0.0
        %1032 = vmatpush.xpose.msra.mxu0 0.0
        %1033 = vmatpush.xpose.msra.mxu0 0.0
        %1034 = vmatpush.xpose.msra.mxu0 0.0
        %1035 = vmatpush.xpose.msra.mxu0 0.0
        %1036 = vmatpush.xpose.msra.mxu0 0.0
        %1037 = vmatpush.xpose.msra.mxu0 %v1020
        %1038 = vmatmul.f32.gmra.mxu0 %v1018
        %v1039 = vpop.f32.mrf.mxu0
        %v1040 = vadd.f32 0.0, %v1039
        %1041 = vdwg.mxu0
        %v1042 = vsel %vm822, %v1040, -inf
        %1043 = vmax.xlane.f32.xlu0 %v1042
        %v1044 = vpop.xlane.xlu0 %1043
        %v1045 = vsub.f32 %v1040, %v1044
        %v1046 = vmul.f32 %v1045, 1.442695
        %v1047 = vpow.pop %v1046
        %v1048 = vsel %vm822, %v1047, 0.0
        %1049 = vadd.xlane.f32.xlu0 %v1048
        %v1050 = vpop.xlane.xlu0 %1049
        %v1051 = vrcp.pop %v1050
        %v1052 = vmul.f32 %v1047, %v1051
        %1053 = vrot.lane.b32.xlu0 %v820, 104
        %v1054 = vpop.permute.xlu0 %1053
        %v1057 = vsel %vm822, %v1052, 0
        %1059 = vmatpush.msra.mxu0 0.0
        %1060 = vmatpush.msra.mxu0 0.0
        %1061 = vmatpush.msra.mxu0 0.0
        %1062 = vmatpush.msra.mxu0 0.0
        %1063 = vmatpush.msra.mxu0 0.0
        %1064 = vmatpush.msra.mxu0 0.0
        %1065 = vmatpush.msra.mxu0 0.0
        %1066 = vmatpush.msra.mxu0 0.0
        %1067 = vmatpush.msra.mxu0 0.0
        %1068 = vmatpush.msra.mxu0 0.0
        %1069 = vmatpush.msra.mxu0 0.0
        %1070 = vmatpush.msra.mxu0 0.0
        %1071 = vmatpush.msra.mxu0 0.0
        %1072 = vmatpush.msra.mxu0 0.0
        %1073 = vmatpush.msra.mxu0 0.0
        %1074 = vmatpush.msra.mxu0 %v1054
        %1075 = vmatmul.f32.gmra.mxu0 %v1057
        %v1076 = vpop.f32.mrf.mxu0
        %v1077 = vadd.f32 0.0, %v1076
        %1078 = vdwg.mxu0
        %1079 = vrot.lane.b32.xlu0 %v921, 8
        %v1080 = vpop.permute.xlu0 %1079
        %1082 = vrot.lane.b32.xlu0 %v987, 16
        %v1083 = vpop.permute.xlu0 %1082
        %1085 = vrot.lane.b32.xlu0 %v1052, 24
        %v1086 = vpop.permute.xlu0 %1085
        %v1088 = vsel %vm822, %v859, %v1080
        %vm1089 = vcmask 130048
        %v1090 = vsel %vm1089, %v1088, %v1083
        %vm1091 = vcmask 195584
        %v1092 = vsel %vm1091, %v1090, %v1086
        %1093 = vst.msk [vmem:[%s636] sm:$0xff] %vm642, %v1092
        %1095 = vrot.lane.b32.xlu0 %v947, 8
        %v1096 = vpop.permute.xlu0 %1095
        %1099 = vrot.lane.b32.xlu0 %v1012, 16
        %v1100 = vpop.permute.xlu0 %1099
        %1103 = vrot.lane.b32.xlu0 %v1077, 24
        %v1104 = vpop.permute.xlu0 %1103
        %v1106 = vsel %vm822, %v881, %v1096
        %v1107 = vsel %vm1089, %v1106, %v1100
        %v1108 = vsel %vm1091, %v1107, %v1104
        %v1109 = vld [vmem:[#allocation13] sm:$0xff]
        %v1110 = vld [vmem:[#allocation13 + $0x8] sm:$0xff]
        %v1111 = vld [vmem:[#allocation13 + $0x10] sm:$0xff]
        %v1112 = vld [vmem:[#allocation13 + $0x18] sm:$0xff]
        %v1113 = vld [vmem:[%s12] sm:$0x1]
        %v1115 = vperm.slane %v1113, 0
        %v1118 = vsel %vm642, %v1108, 0
        %1120 = vmatpush.msra.mxu0 0.0
        %1121 = vmatpush.msra.mxu0 0.0
        %1122 = vmatpush.msra.mxu0 0.0
        %1123 = vmatpush.msra.mxu0 0.0
        %1124 = vmatpush.msra.mxu0 0.0
        %1125 = vmatpush.msra.mxu0 0.0
        %1126 = vmatpush.msra.mxu0 0.0
        %1127 = vmatpush.msra.mxu0 0.0
        %1128 = vmatpush.msra.mxu0 0.0
        %1129 = vmatpush.msra.mxu0 0.0
        %1130 = vmatpush.msra.mxu0 0.0
        %1131 = vmatpush.msra.mxu0 0.0
        %1132 = vmatpush.msra.mxu0 %v1112
        %1133 = vmatpush.msra.mxu0 %v1111
        %1134 = vmatpush.msra.mxu0 %v1110
        %1135 = vmatpush.msra.mxu0 %v1109
        %1136 = vmatmul.f32.gmra.mxu0 %v1118
        %v1137 = vpop.f32.mrf.mxu0
        %v1138 = vadd.f32 %v1115, %v1137
        %1139 = vdwg.mxu0
        %v1140 = vadd.f32 %v1138, %v637
        %1141 = vst.msk [vmem:[%s629] sm:$0xff] %vm642, %v1140
        %s1142 = sand.u32 %s336, 1
        %s1143 = scalar_lea.sflag [#allocation4], %s1142
        %s1144 = sand.u32 %s336, 1
        %s1145 = smul.addr %s1144, 8
        %s1146 = scalar_lea.vmem [#allocation14], %s1145
        %s1147 = sand.u32 %s362, 1
        %s1148 = scalar_lea.sflag [#allocation16], %s1147
        %s1149 = sand.u32 %s362, 1
        %s1150 = smul.addr %s1149, 8
        %s1151 = scalar_lea.vmem [#allocation15], %s1150
        // Predicated region
        $region101: #{tpu_custom_call.1} parent=71 // pred_check
          %p1152 = pneg %p346
        $region102: #{tpu_custom_call.1} parent=71 // pred_check_branch
          %1154 = sbr.rel (%p1152) target = $region104
        $region103: #{tpu_custom_call.1} parent=71 // pred_region
          %1156 = vsyncadd %s1143, 0
          %s1157 = smul.addr %s40, 8
          %s1158 = scalar_lea.hbm %s13, %s1157
          %s1160 = sshll.u32 %s1146, 4
          %s1161 = int_to_ptr.vmem [resolvable:$true] %s1160
          %s1162 = sshll.u32 %s1158, 4
          %s1163 = int_to_ptr.hbm [resolvable:$true] %s1162
          %1165 = dma.vmem_to_hbm [thread:$0]  %s1161, 128, %s1163, %s1143
        $region104: #{tpu_custom_call.1} parent=71 // pred_fallthru
          _
        // Predicated region
        $region105: #{tpu_custom_call.1} parent=71 // pred_check
          %p1166 = pneg %p372
        $region106: #{tpu_custom_call.1} parent=71 // pred_check_branch
          %1168 = sbr.rel (%p1166) target = $region108
        $region107: #{tpu_custom_call.1} parent=71 // pred_region
          %1170 = vsyncadd %s1148, 0
          %s1171 = smul.addr %s40, 8
          %s1172 = scalar_lea.hbm %s14, %s1171
          %s1174 = sshll.u32 %s1151, 4
          %s1175 = int_to_ptr.vmem [resolvable:$true] %s1174
          %s1176 = sshll.u32 %s1172, 4
          %s1177 = int_to_ptr.hbm [resolvable:$true] %s1176
          %1179 = dma.vmem_to_hbm [thread:$0]  %s1175, 128, %s1177, %s1148
        $region108: #{tpu_custom_call.1} parent=71 // pred_fallthru
          _
      $region72: #{tpu_custom_call.1} parent=5 // pred_fallthru
        _
      %p1180 = scmp.le.s32.totalorder 2, %s35
      // Predicated region
      $region109: #{tpu_custom_call.1} parent=5 // pred_check
        %p1181 = pneg %p1180
      $region110: #{tpu_custom_call.1} parent=5 // pred_check_branch
        %1183 = sbr.rel (%p1181) target = $region112
      $region111: #{tpu_custom_call.1} parent=5 // pred_region
        %s1184 = ssub.s32 %s35, 2
        // Predicated region
        $region113: #{tpu_custom_call.1} parent=111 // pred_check
          %p1185 = pneg %p352
        $region114: #{tpu_custom_call.1} parent=111 // pred_check_branch
          %1187 = sbr.rel (%p1185) target = $region116
        $region115: #{tpu_custom_call.1} parent=111 // pred_region
          %s1188 = sand.u32 %s337, 1
          %s1189 = scalar_lea.sflag [#allocation4], %s1188
          %s1190 = sand.u32 %s337, 1
          %s1191 = smul.addr %s1190, 8
          %s1192 = scalar_lea.vmem [#allocation14], %s1191
          %1194 = dma.done %s1189, 128
        $region116: #{tpu_custom_call.1} parent=111 // pred_fallthru
          _
        // Predicated region
        $region117: #{tpu_custom_call.1} parent=111 // pred_check
          %p1195 = pneg %p378
        $region118: #{tpu_custom_call.1} parent=111 // pred_check_branch
          %1197 = sbr.rel (%p1195) target = $region120
        $region119: #{tpu_custom_call.1} parent=111 // pred_region
          %s1198 = sand.u32 %s363, 1
          %s1199 = scalar_lea.sflag [#allocation16], %s1198
          %s1200 = sand.u32 %s363, 1
          %s1201 = smul.addr %s1200, 8
          %s1202 = scalar_lea.vmem [#allocation15], %s1201
          %1204 = dma.done %s1199, 128
        $region120: #{tpu_custom_call.1} parent=111 // pred_fallthru
          _
      $region112: #{tpu_custom_call.1} parent=5 // pred_fallthru
        _
    $region6: #{tpu_custom_call.1} parent=1 // loop_footer
      %s39 = sadd.s32 1, %s35
    $region7: #{tpu_custom_call.1} parent=1 // loop_footer_branch
      %34 = sbr.rel target = $region3
    $region8: #{tpu_custom_call.1} parent=1 // loop_exit
      _
    %1205 = vsyncpa [#allocation3], 1
    %s1206 = scalar_lea.sflag [#allocation3], 1
    %1207 = vsyncpa %s1206, 1
    %1208 = vsyncpa [#allocation6], 1
    %s1209 = scalar_lea.sflag [#allocation6], 1
    %1210 = vsyncpa %s1209, 1
    %1211 = vsyncpa [#allocation9], 1
    %1212 = vsyncpa [#allocation12], 1
    %1213 = vsyncpa [#allocation4], 1
    %s1214 = scalar_lea.sflag [#allocation4], 1
    %1215 = vsyncpa %s1214, 1
    %1216 = vsyncpa [#allocation16], 1
    %s1217 = scalar_lea.sflag [#allocation16], 1
    %1218 = vsyncpa %s1217, 1

</llo_original>
